<compile_context>
chip_gen: v5e
topology: v5e:2x2
jax: 0.10.0
libtpu: 0.0.40
codegen_flags: <defaults>
</compile_context>

<pallas_src>
import functools
import math

import jax
import jax.numpy as jnp
import numpy as np
from jax import lax
from jax.experimental import pallas as pl
from jax.experimental.pallas import tpu as pltpu


# ---------------------------------------------------------------------------
# Host-side constant builders
# ---------------------------------------------------------------------------
def _interp_matrix(n_in, n_out):
    """Bilinear (align_corners=True) 1-D interpolation matrix (n_out, n_in)."""
    A = np.zeros((n_out, n_in), np.float32)
    if n_in == 1:
        A[:, 0] = 1.0
        return A
    for o in range(n_out):
        src = o * (n_in - 1) / (n_out - 1)
        i0 = min(int(np.floor(src)), n_in - 1)
        i1 = min(i0 + 1, n_in - 1)
        f = src - i0
        A[o, i0] += 1.0 - f
        A[o, i1] += f
    return A


def _pool_matrix(h, w, n):
    """AvgPool2d(3, stride=2, padding=1, count_include_pad=True) as a
    block-diagonal (n*h*w, n*ho*wo) matrix acting on lane-flattened,
    batch-folded spatial columns."""
    ho, wo = (h + 2 - 3) // 2 + 1, (w + 2 - 3) // 2 + 1
    P1 = np.zeros((h * w, ho * wo), np.float32)
    for oh in range(ho):
        for ow in range(wo):
            for kh in range(3):
                for kw in range(3):
                    ih, iw = 2 * oh - 1 + kh, 2 * ow - 1 + kw
                    if 0 <= ih < h and 0 <= iw < w:
                        P1[ih * w + iw, oh * wo + ow] += 1.0 / 9.0
    P = np.zeros((n * h * w, n * ho * wo), np.float32)
    for i in range(n):
        P[i * h * w:(i + 1) * h * w, i * ho * wo:(i + 1) * ho * wo] = P1
    return jnp.asarray(P, jnp.bfloat16)


def _up_matrix(h, w, n):
    """2x bilinear (align_corners=True) upsample as a block-diagonal
    (n*h*w, n*2h*2w) matrix for batch-folded lanes."""
    Ah = _interp_matrix(h, 2 * h)          # (2h, h)
    Aw = _interp_matrix(w, 2 * w)          # (2w, w)
    U1 = np.einsum("oi,pj->ijop", Ah, Aw).reshape(h * w, 4 * h * w)
    U = np.zeros((n * h * w, n * 4 * h * w), np.float32)
    for i in range(n):
        U[i * h * w:(i + 1) * h * w, i * 4 * h * w:(i + 1) * 4 * h * w] = U1
    return jnp.asarray(U, jnp.bfloat16)


def _tap_masks(h, w, n):
    """(9, n*h*w) f32 validity masks for the 9 taps of a 3x3/pad=1 conv on a
    batch-folded lane axis.  A masked zero covers both out-of-image taps and
    any roll wrap-around across image boundaries."""
    m1 = np.zeros((9, h * w), np.float32)
    for dh in (-1, 0, 1):
        for dw in (-1, 0, 1):
            t = (dh + 1) * 3 + (dw + 1)
            for hh in range(h):
                for ww in range(w):
                    if 0 <= hh + dh < h and 0 <= ww + dw < w:
                        m1[t, hh * w + ww] = 1.0
    return jnp.asarray(np.tile(m1, (1, n)), jnp.float32)


def _pack_1x1(w, scale):
    """Grouped 1x1 conv weight (G, cog, cig, 1, 1) + BN scale -> block-diag
    (Cout, Cin) bf16 matmul matrix."""
    G, cog, cig = w.shape[:3]
    wn = np.asarray(w)[..., 0, 0]
    sn = np.asarray(scale)
    Wk = np.zeros((G * cog, G * cig), np.float32)
    for g in range(G):
        Wk[g * cog:(g + 1) * cog, g * cig:(g + 1) * cig] = (
            wn[g] * sn[g * cog:(g + 1) * cog, None])
    return jnp.asarray(Wk, jnp.bfloat16)


def _pack_3x3_stacked(w, scale):
    """Grouped 3x3 conv weight (G, cog, cig, 3, 3) + BN scale -> K-stacked
    (Cout, 9*Cin) bf16 matrix: column block t holds the tap-t block-diag."""
    G, cog, cig = w.shape[:3]
    wn = np.asarray(w)
    sn = np.asarray(scale)
    cin, cout = G * cig, G * cog
    Wk = np.zeros((cout, 9 * cin), np.float32)
    for kh in range(3):
        for kw in range(3):
            t = kh * 3 + kw
            for g in range(G):
                Wk[g * cog:(g + 1) * cog,
                   t * cin + g * cig:t * cin + (g + 1) * cig] = (
                       wn[g, :, :, kh, kw] * sn[g * cog:(g + 1) * cog, None])
    return jnp.asarray(Wk, jnp.bfloat16)


# ---------------------------------------------------------------------------
# Pallas kernel
# ---------------------------------------------------------------------------
def _tap_stack(x_f32, mask_ref, w_img):
    """Build the (9*C, L) bf16 K-stacked tap matrix of a 3x3/pad=1 conv.
    Each tap is a lane rotation (XLU, co-issues with MXU) of the f32
    activation, masked in f32, cast to bf16.  Centre tap needs no mask."""
    L = x_f32.shape[-1]
    taps = []
    for dh in (-1, 0, 1):
        for dw in (-1, 0, 1):
            off = dh * w_img + dw
            if off == 0:
                tap = x_f32                                   # always in-bounds
            else:
                t = (dh + 1) * 3 + (dw + 1)
                tap = (pltpu.roll(x_f32, shift=(-off) % L, axis=1)
                       * mask_ref[t:t + 1, :])
            taps.append(tap.astype(jnp.bfloat16))
    return jnp.concatenate(taps, axis=0)


def _airnext_bottleneck_kernel(x_ref,
                               w1a1, b1a1, w2, b2, w3, b3,
                               pool, aw2, ab2, aw3, ab3, up,
                               mb, ma,
                               o_ref,
                               *, gw, w_img, w_img_p):
    f32 = jnp.float32
    x = x_ref[...]                                  # (Cin, L) f32, lane-dense
    xb = x.astype(jnp.bfloat16)

    # body conv1 and AirBlock conv1 share RHS x: one merged MXU pass.
    y = jnp.maximum(
        jnp.dot(w1a1[...], xb, preferred_element_type=f32) + b1a1[...], 0.0)
    x1 = y[:gw, :]                                  # body conv1+BN+ReLU
    a1 = y[gw:, :]                                  # air  conv1+BN+ReLU

    # ---- AirBlock: avgpool3x3/s2 -> conv3x3(grouped)+BN+ReLU -> conv1x1 ->
    #      BN -> 2x bilinear (align_corners) -> sigmoid
    ap = jnp.dot(a1.astype(jnp.bfloat16), pool[...],
                 preferred_element_type=f32)                       # (Ca, Lp)
    a2 = jnp.maximum(
        jnp.dot(aw2[...], _tap_stack(ap, ma, w_img_p),
                preferred_element_type=f32) + ab2[...], 0.0)
    a3 = jnp.dot(aw3[...], a2.astype(jnp.bfloat16),
                 preferred_element_type=f32) + ab3[...]            # (gw, Lp)
    z = jnp.dot(a3.astype(jnp.bfloat16), up[...],
                preferred_element_type=f32)                        # (gw, L)
    att = pl.reciprocal(1.0 + jnp.exp(-z), approx=False)           # sigmoid

    # ---- body: conv3x3(grouped)+BN+ReLU (one K-stacked matmul) -> *att ->
    #      conv1x1+BN (no activation / residual: that's the enclosing Unit)
    x2 = jnp.maximum(
        jnp.dot(w2[...], _tap_stack(x1, mb, w_img),
                preferred_element_type=f32) + b2[...], 0.0)
    x2 = x2 * att
    o_ref[...] = jnp.dot(w3[...], x2.astype(jnp.bfloat16),
                         preferred_element_type=f32) + b3[...]


def airnext_bottleneck_forward(x_nchw, K, cfg):
    """AirNeXtBottleneck forward.  x_nchw: (N, Cin, H, W) f32 -> NCHW out."""
    # TODO(synk): use_air_block=False / stride>1 plain-bottleneck variant is
    # not implemented; the tested config uses the air path.
    assert cfg["use_air_block"] and cfg["stride"] == 1
    N, C, H, W = x_nchw.shape
    HW = H * W
    L = N * HW
    Hp, Wp = (H + 2 - 3) // 2 + 1, (W + 2 - 3) // 2 + 1
    gw, out_ch = cfg["group_width"], cfg["out_ch"]

    # NCHW -> (C, N*HW): batch folded into lanes (tiny wrapper transpose).
    x2d = jnp.transpose(x_nchw.reshape(N, C, HW), (1, 0, 2)).reshape(C, L)

    operands = [x2d,
                K["w1a1"], K["b1a1"], K["w2"], K["b2"], K["w3"], K["b3"],
                K["pool"], K["aw2"], K["ab2"], K["aw3"], K["ab3"], K["up"],
                K["mask_b"], K["mask_a"]]

    def _full_spec(a):
        nd = a.ndim
        return pl.BlockSpec(a.shape, lambda *_, _nd=nd: (0,) * _nd)

    out = pl.pallas_call(
        functools.partial(_airnext_bottleneck_kernel,
                          gw=gw, w_img=W, w_img_p=Wp),
        out_shape=jax.ShapeDtypeStruct((out_ch, L), jnp.float32),
        grid=(1,),
        in_specs=[_full_spec(a) for a in operands],
        out_specs=pl.BlockSpec((out_ch, L), lambda i: (0, 0)),
        compiler_params=pltpu.CompilerParams(
            dimension_semantics=("arbitrary",),
            vmem_limit_bytes=16 * 1024 * 1024),
    )(*operands)

    return jnp.transpose(out.reshape(out_ch, N, HW),
                         (1, 0, 2)).reshape(N, out_ch, H, W)


# ---------------------------------------------------------------------------
# Deterministic synthetic parameters (BN folded in eval mode)
# ---------------------------------------------------------------------------
def init_params(key, in_ch, out_ch, stride, cardinality, bottleneck_width,
                ratio):
    mid = out_ch // 4
    D = int(math.floor(mid * (bottleneck_width / 64.0)))
    gw = cardinality * D
    air_groups = cardinality // ratio
    air_mid = gw // ratio

    keys = iter(jax.random.split(key, 64))

    def conv_w(groups, cin, cout, k):
        cig, cog = cin // groups, cout // groups
        fan = cig * k * k
        return (jax.random.normal(next(keys), (groups, cog, cig, k, k),
                                  jnp.float32) / np.sqrt(fan))

    def bn_p(c):
        g = jax.random.uniform(next(keys), (c,), jnp.float32, 0.5, 1.5)
        b = 0.1 * jax.random.normal(next(keys), (c,), jnp.float32)
        m = 0.1 * jax.random.normal(next(keys), (c,), jnp.float32)
        v = jax.random.uniform(next(keys), (c,), jnp.float32, 0.5, 1.5)
        s = g / jnp.sqrt(v + 1e-5)
        return s, b - m * s

    raw = {}
    raw["w1"] = conv_w(1, in_ch, gw, 1);            raw["s1"], raw["b1"] = bn_p(gw)
    raw["w2"] = conv_w(cardinality, gw, gw, 3);     raw["s2"], raw["b2"] = bn_p(gw)
    raw["w3"] = conv_w(1, gw, out_ch, 1);           raw["s3"], raw["b3"] = bn_p(out_ch)
    raw["aw1"] = conv_w(air_groups, in_ch, air_mid, 1)
    raw["as1"], raw["ab1"] = bn_p(air_mid)
    raw["aw2"] = conv_w(air_groups, air_mid, air_mid, 3)
    raw["as2"], raw["ab2"] = bn_p(air_mid)
    raw["aw3"] = conv_w(1, air_mid, gw, 1)          # AirBlock conv3 (ungrouped)
    raw["as3"], raw["ab3"] = bn_p(gw)               # AirBlock's separate BN

    cfg = dict(cardinality=cardinality, air_groups=air_groups, group_width=gw,
               air_mid=air_mid, in_ch=in_ch, out_ch=out_ch, stride=stride,
               use_air_block=(stride == 1 and mid < 512))
    return raw, cfg


def pack_params(raw, cfg, N, H, W):
    Hp, Wp = (H + 2 - 3) // 2 + 1, (W + 2 - 3) // 2 + 1
    col = lambda v: jnp.asarray(np.asarray(v), jnp.float32).reshape(-1, 1)
    # conv1 (body) and air conv1 stacked: one matmul against shared RHS x.
    w1a1 = jnp.concatenate([_pack_1x1(raw["w1"], raw["s1"]),
                            _pack_1x1(raw["aw1"], raw["as1"])], axis=0)
    b1a1 = jnp.concatenate([col(raw["b1"]), col(raw["ab1"])], axis=0)
    return {
        "w1a1": w1a1, "b1a1": b1a1,
        "w2": _pack_3x3_stacked(raw["w2"], raw["s2"]),   "b2": col(raw["b2"]),
        "w3": _pack_1x1(raw["w3"], raw["s3"]),           "b3": col(raw["b3"]),
        "pool": _pool_matrix(H, W, N),
        "aw2": _pack_3x3_stacked(raw["aw2"], raw["as2"]), "ab2": col(raw["ab2"]),
        "aw3": _pack_1x1(raw["aw3"], raw["as3"]),         "ab3": col(raw["ab3"]),
        "up": _up_matrix(Hp, Wp, N),
        "mask_b": _tap_masks(H, W, N),
        "mask_a": _tap_masks(Hp, Wp, N),
    }


# ---------------------------------------------------------------------------
# Independent reference (lax.conv / reduce_window / einsum, NCHW).
# Matmul inputs are rounded to bf16 to mirror the kernel's bf16 MXU path
# (accumulation stays f32); BN / ReLU / sigmoid are f32.
# ---------------------------------------------------------------------------
def reference_forward(x, raw, cfg):
    bf = lambda a: a.astype(jnp.bfloat16)
    relu = lambda v: jnp.maximum(v, 0.0)

    def conv(inp, wg, groups, pad, k):
        cout = wg.shape[0] * wg.shape[1]
        w = wg.reshape(cout, wg.shape[2], k, k)
        return lax.conv_general_dilated(
            bf(inp), bf(w), (1, 1), pad,
            dimension_numbers=("NCHW", "OIHW", "NCHW"),
            feature_group_count=groups,
            preferred_element_type=jnp.float32)

    def bn(y, s, b):
        return y * s[None, :, None, None] + b[None, :, None, None]

    Ga, card = cfg["air_groups"], cfg["cardinality"]
    inv9 = float(jnp.bfloat16(1.0 / 9.0))   # kernel pooling weights are bf16

    # AirBlock
    a = relu(bn(conv(x, raw["aw1"], Ga, "VALID", 1), raw["as1"], raw["ab1"]))
    a = lax.reduce_window(bf(a).astype(jnp.float32), 0.0, lax.add,
                          (1, 1, 3, 3), (1, 1, 2, 2),
                          ((0, 0), (0, 0), (1, 1), (1, 1))) * inv9
    a = relu(bn(conv(a, raw["aw2"], Ga, ((1, 1), (1, 1)), 3),
                raw["as2"], raw["ab2"]))
    a = bn(conv(a, raw["aw3"], 1, "VALID", 1), raw["as3"], raw["ab3"])
    Ah = jnp.asarray(_interp_matrix(a.shape[2], 2 * a.shape[2]))
    Aw = jnp.asarray(_interp_matrix(a.shape[3], 2 * a.shape[3]))
    af = bf(a).astype(jnp.float32)
    up = jnp.einsum("oh,nchw->ncow", Ah, af, precision="highest")
    up = jnp.einsum("pw,ncow->ncop", Aw, up, precision="highest")
    att = jax.nn.sigmoid(up)

    # body
    x1 = relu(bn(conv(x, raw["w1"], 1, "VALID", 1), raw["s1"], raw["b1"]))
    x2 = relu(bn(conv(x1, raw["w2"], card, ((1, 1), (1, 1)), 3),
                 raw["s2"], raw["b2"]))
    x2 = x2 * att
    return bn(conv(x2, raw["w3"], 1, "VALID", 1), raw["s3"], raw["b3"])


# ---------------------------------------------------------------------------
if __name__ == "__main__":
    # AirNeXtBottleneck(in=32, out=32, stride=1, cardinality=4,
    #                   bottleneck_width=32, ratio=2) on a 2x32x16x16 input.
    in_channels = out_channels = 32
    stride, cardinality, bottleneck_width, ratio = 1, 4, 32, 2
    N, H, W = 2, 16, 16

    key = jax.random.PRNGKey(0)
    kp, kx = jax.random.split(key)
    raw, cfg = init_params(kp, in_channels, out_channels, stride, cardinality,
                           bottleneck_width, ratio)
    K = pack_params(raw, cfg, N, H, W)

    x_nchw = jax.random.normal(kx, (N, in_channels, H, W), jnp.float32)

    out = airnext_bottleneck_forward(x_nchw, K, cfg)
    jax.block_until_ready(out)
    assert out.shape == (N, out_channels, H, W)

    ref = reference_forward(x_nchw, raw, cfg)
    # Tolerance reflects the deliberate bf16-MXU-operand design (v6e/v7x
    # native); structural errors (masks/grouping/pool/align_corners) would be O(1).
    np.testing.assert_allclose(np.asarray(out), np.asarray(ref),
                               rtol=2e-2, atol=3e-2)
    print("KERNEL_OK")
</pallas_src>

<mosaic_0001>
module attributes {stable_mosaic.version = 11 : i64} {
  func.func @_airnext_bottleneck_kernel(%arg0: i32, %arg1: memref<32x512xf32, #tpu.memory_space<vmem>>, %arg2: memref<24x32xbf16, #tpu.memory_space<vmem>>, %arg3: memref<24x1xf32, #tpu.memory_space<vmem>>, %arg4: memref<16x144xbf16, #tpu.memory_space<vmem>>, %arg5: memref<16x1xf32, #tpu.memory_space<vmem>>, %arg6: memref<32x16xbf16, #tpu.memory_space<vmem>>, %arg7: memref<32x1xf32, #tpu.memory_space<vmem>>, %arg8: memref<512x128xbf16, #tpu.memory_space<vmem>>, %arg9: memref<8x72xbf16, #tpu.memory_space<vmem>>, %arg10: memref<8x1xf32, #tpu.memory_space<vmem>>, %arg11: memref<16x8xbf16, #tpu.memory_space<vmem>>, %arg12: memref<16x1xf32, #tpu.memory_space<vmem>>, %arg13: memref<128x512xbf16, #tpu.memory_space<vmem>>, %arg14: memref<9x512xf32, #tpu.memory_space<vmem>>, %arg15: memref<9x128xf32, #tpu.memory_space<vmem>>, %arg16: memref<32x512xf32, #tpu.memory_space<vmem>>) attributes {dimension_semantics = [#tpu.dimension_semantics<arbitrary>], iteration_bounds = array<i64: 1>, scalar_prefetch = 0 : i64, scratch_operands = 0 : i64, tpu.core_type = #tpu.core_type<tc>, window_params = [{pipeline_mode = #tpu.pipeline_mode<synchronous>, transform_indices = @transform_0, window_bounds = array<i64: 32, 512>}, {pipeline_mode = #tpu.pipeline_mode<synchronous>, transform_indices = @transform_1, window_bounds = array<i64: 24, 32>}, {pipeline_mode = #tpu.pipeline_mode<synchronous>, transform_indices = @transform_2, window_bounds = array<i64: 24, 1>}, {pipeline_mode = #tpu.pipeline_mode<synchronous>, transform_indices = @transform_3, window_bounds = array<i64: 16, 144>}, {pipeline_mode = #tpu.pipeline_mode<synchronous>, transform_indices = @transform_4, window_bounds = array<i64: 16, 1>}, {pipeline_mode = #tpu.pipeline_mode<synchronous>, transform_indices = @transform_5, window_bounds = array<i64: 32, 16>}, {pipeline_mode = #tpu.pipeline_mode<synchronous>, transform_indices = @transform_6, window_bounds = array<i64: 32, 1>}, {pipeline_mode = #tpu.pipeline_mode<synchronous>, transform_indices = @transform_7, window_bounds = array<i64: 512, 128>}, {pipeline_mode = #tpu.pipeline_mode<synchronous>, transform_indices = @transform_8, window_bounds = array<i64: 8, 72>}, {pipeline_mode = #tpu.pipeline_mode<synchronous>, transform_indices = @transform_9, window_bounds = array<i64: 8, 1>}, {pipeline_mode = #tpu.pipeline_mode<synchronous>, transform_indices = @transform_10, window_bounds = array<i64: 16, 8>}, {pipeline_mode = #tpu.pipeline_mode<synchronous>, transform_indices = @transform_11, window_bounds = array<i64: 16, 1>}, {pipeline_mode = #tpu.pipeline_mode<synchronous>, transform_indices = @transform_12, window_bounds = array<i64: 128, 512>}, {pipeline_mode = #tpu.pipeline_mode<synchronous>, transform_indices = @transform_13, window_bounds = array<i64: 9, 512>}, {pipeline_mode = #tpu.pipeline_mode<synchronous>, transform_indices = @transform_14, window_bounds = array<i64: 9, 128>}, {pipeline_mode = #tpu.pipeline_mode<synchronous>, transform_indices = @transform_15, window_bounds = array<i64: 32, 512>}]} {
    %c0 = arith.constant 0 : index
    %c0_0 = arith.constant 0 : index
    %0 = vector.load %arg1[%c0, %c0_0] : memref<32x512xf32, #tpu.memory_space<vmem>>, vector<32x512xf32>
    %1 = arith.truncf %0 : vector<32x512xf32> to vector<32x512xbf16>
    %c0_1 = arith.constant 0 : index
    %c0_2 = arith.constant 0 : index
    %2 = vector.load %arg2[%c0_1, %c0_2] : memref<24x32xbf16, #tpu.memory_space<vmem>>, vector<24x32xbf16>
    %cst = arith.constant dense<0.000000e+00> : vector<24x512xf32>
    %3 = tpu.matmul %2, %1, %cst {dimension_numbers = #tpu.dot_dimension_numbers<[1], [0], [0], [1], [0, 0, 1, 1], [], []>} : vector<24x32xbf16>, vector<32x512xbf16>, vector<24x512xf32> -> vector<24x512xf32>
    %c0_3 = arith.constant 0 : index
    %c0_4 = arith.constant 0 : index
    %4 = vector.load %arg3[%c0_3, %c0_4] : memref<24x1xf32, #tpu.memory_space<vmem>>, vector<24x1xf32>
    %5 = vector.broadcast %4 : vector<24x1xf32> to vector<24x512xf32>
    %6 = arith.addf %3, %5 : vector<24x512xf32>
    %cst_5 = arith.constant 0.000000e+00 : f32
    %7 = vector.broadcast %cst_5 : f32 to vector<24x512xf32>
    %8 = arith.maximumf %6, %7 : vector<24x512xf32>
    %9 = vector.extract_strided_slice %8 {offsets = [0, 0], sizes = [16, 512], strides = [1, 1]} : vector<24x512xf32> to vector<16x512xf32>
    %10 = vector.extract_strided_slice %8 {offsets = [16, 0], sizes = [8, 512], strides = [1, 1]} : vector<24x512xf32> to vector<8x512xf32>
    %11 = arith.truncf %10 : vector<8x512xf32> to vector<8x512xbf16>
    %c0_6 = arith.constant 0 : index
    %c0_7 = arith.constant 0 : index
    %12 = vector.load %arg8[%c0_6, %c0_7] : memref<512x128xbf16, #tpu.memory_space<vmem>>, vector<512x128xbf16>
    %cst_8 = arith.constant dense<0.000000e+00> : vector<8x128xf32>
    %13 = tpu.matmul %11, %12, %cst_8 {dimension_numbers = #tpu.dot_dimension_numbers<[1], [0], [0], [1], [0, 0, 1, 1], [], []>} : vector<8x512xbf16>, vector<512x128xbf16>, vector<8x128xf32> -> vector<8x128xf32>
    %c0_9 = arith.constant 0 : index
    %c0_10 = arith.constant 0 : index
    %14 = vector.load %arg9[%c0_9, %c0_10] : memref<8x72xbf16, #tpu.memory_space<vmem>>, vector<8x72xbf16>
    %c9_i32 = arith.constant 9 : i32
    %15 = tpu.dynamic_rotate %13 by %c9_i32 dim 1 : vector<8x128xf32>, i32 -> vector<8x128xf32>
    %c0_11 = arith.constant 0 : index
    %c0_12 = arith.constant 0 : index
    %16 = vector.load %arg15[%c0_11, %c0_12] : memref<9x128xf32, #tpu.memory_space<vmem>>, vector<1x128xf32>
    %17 = vector.broadcast %16 : vector<1x128xf32> to vector<8x128xf32>
    %18 = arith.mulf %15, %17 : vector<8x128xf32>
    %19 = arith.truncf %18 : vector<8x128xf32> to vector<8x128xbf16>
    %c8_i32 = arith.constant 8 : i32
    %20 = tpu.dynamic_rotate %13 by %c8_i32 dim 1 : vector<8x128xf32>, i32 -> vector<8x128xf32>
    %c1 = arith.constant 1 : index
    %c0_13 = arith.constant 0 : index
    %21 = vector.load %arg15[%c1, %c0_13] : memref<9x128xf32, #tpu.memory_space<vmem>>, vector<1x128xf32>
    %22 = vector.broadcast %21 : vector<1x128xf32> to vector<8x128xf32>
    %23 = arith.mulf %20, %22 : vector<8x128xf32>
    %24 = arith.truncf %23 : vector<8x128xf32> to vector<8x128xbf16>
    %c7_i32 = arith.constant 7 : i32
    %25 = tpu.dynamic_rotate %13 by %c7_i32 dim 1 : vector<8x128xf32>, i32 -> vector<8x128xf32>
    %c2 = arith.constant 2 : index
    %c0_14 = arith.constant 0 : index
    %26 = vector.load %arg15[%c2, %c0_14] : memref<9x128xf32, #tpu.memory_space<vmem>>, vector<1x128xf32>
    %27 = vector.broadcast %26 : vector<1x128xf32> to vector<8x128xf32>
    %28 = arith.mulf %25, %27 : vector<8x128xf32>
    %29 = arith.truncf %28 : vector<8x128xf32> to vector<8x128xbf16>
    %c1_i32 = arith.constant 1 : i32
    %30 = tpu.dynamic_rotate %13 by %c1_i32 dim 1 : vector<8x128xf32>, i32 -> vector<8x128xf32>
    %c3 = arith.constant 3 : index
    %c0_15 = arith.constant 0 : index
    %31 = vector.load %arg15[%c3, %c0_15] : memref<9x128xf32, #tpu.memory_space<vmem>>, vector<1x128xf32>
    %32 = vector.broadcast %31 : vector<1x128xf32> to vector<8x128xf32>
    %33 = arith.mulf %30, %32 : vector<8x128xf32>
    %34 = arith.truncf %33 : vector<8x128xf32> to vector<8x128xbf16>
    %35 = arith.truncf %13 : vector<8x128xf32> to vector<8x128xbf16>
    %c127_i32 = arith.constant 127 : i32
    %36 = tpu.dynamic_rotate %13 by %c127_i32 dim 1 : vector<8x128xf32>, i32 -> vector<8x128xf32>
    %c5 = arith.constant 5 : index
    %c0_16 = arith.constant 0 : index
    %37 = vector.load %arg15[%c5, %c0_16] : memref<9x128xf32, #tpu.memory_space<vmem>>, vector<1x128xf32>
    %38 = vector.broadcast %37 : vector<1x128xf32> to vector<8x128xf32>
    %39 = arith.mulf %36, %38 : vector<8x128xf32>
    %40 = arith.truncf %39 : vector<8x128xf32> to vector<8x128xbf16>
    %c121_i32 = arith.constant 121 : i32
    %41 = tpu.dynamic_rotate %13 by %c121_i32 dim 1 : vector<8x128xf32>, i32 -> vector<8x128xf32>
    %c6 = arith.constant 6 : index
    %c0_17 = arith.constant 0 : index
    %42 = vector.load %arg15[%c6, %c0_17] : memref<9x128xf32, #tpu.memory_space<vmem>>, vector<1x128xf32>
    %43 = vector.broadcast %42 : vector<1x128xf32> to vector<8x128xf32>
    %44 = arith.mulf %41, %43 : vector<8x128xf32>
    %45 = arith.truncf %44 : vector<8x128xf32> to vector<8x128xbf16>
    %c120_i32 = arith.constant 120 : i32
    %46 = tpu.dynamic_rotate %13 by %c120_i32 dim 1 : vector<8x128xf32>, i32 -> vector<8x128xf32>
    %c7 = arith.constant 7 : index
    %c0_18 = arith.constant 0 : index
    %47 = vector.load %arg15[%c7, %c0_18] : memref<9x128xf32, #tpu.memory_space<vmem>>, vector<1x128xf32>
    %48 = vector.broadcast %47 : vector<1x128xf32> to vector<8x128xf32>
    %49 = arith.mulf %46, %48 : vector<8x128xf32>
    %50 = arith.truncf %49 : vector<8x128xf32> to vector<8x128xbf16>
    %c119_i32 = arith.constant 119 : i32
    %51 = tpu.dynamic_rotate %13 by %c119_i32 dim 1 : vector<8x128xf32>, i32 -> vector<8x128xf32>
    %c8 = arith.constant 8 : index
    %c0_19 = arith.constant 0 : index
    %52 = vector.load %arg15[%c8, %c0_19] : memref<9x128xf32, #tpu.memory_space<vmem>>, vector<1x128xf32>
    %53 = vector.broadcast %52 : vector<1x128xf32> to vector<8x128xf32>
    %54 = arith.mulf %51, %53 : vector<8x128xf32>
    %55 = arith.truncf %54 : vector<8x128xf32> to vector<8x128xbf16>
    %56 = tpu.concatenate %19, %24, %29, %34, %35, %40, %45, %50, %55 in 0 : vector<8x128xbf16>, vector<8x128xbf16>, vector<8x128xbf16>, vector<8x128xbf16>, vector<8x128xbf16>, vector<8x128xbf16>, vector<8x128xbf16>, vector<8x128xbf16>, vector<8x128xbf16> -> vector<72x128xbf16>
    %cst_20 = arith.constant dense<0.000000e+00> : vector<8x128xf32>
    %57 = tpu.matmul %14, %56, %cst_20 {dimension_numbers = #tpu.dot_dimension_numbers<[1], [0], [0], [1], [0, 0, 1, 1], [], []>} : vector<8x72xbf16>, vector<72x128xbf16>, vector<8x128xf32> -> vector<8x128xf32>
    %c0_21 = arith.constant 0 : index
    %c0_22 = arith.constant 0 : index
    %58 = vector.load %arg10[%c0_21, %c0_22] : memref<8x1xf32, #tpu.memory_space<vmem>>, vector<8x1xf32>
    %59 = vector.broadcast %58 : vector<8x1xf32> to vector<8x128xf32>
    %60 = arith.addf %57, %59 : vector<8x128xf32>
    %cst_23 = arith.constant 0.000000e+00 : f32
    %61 = vector.broadcast %cst_23 : f32 to vector<8x128xf32>
    %62 = arith.maximumf %60, %61 : vector<8x128xf32>
    %c0_24 = arith.constant 0 : index
    %c0_25 = arith.constant 0 : index
    %63 = vector.load %arg11[%c0_24, %c0_25] : memref<16x8xbf16, #tpu.memory_space<vmem>>, vector<16x8xbf16>
    %64 = arith.truncf %62 : vector<8x128xf32> to vector<8x128xbf16>
    %cst_26 = arith.constant dense<0.000000e+00> : vector<16x128xf32>
    %65 = tpu.matmul %63, %64, %cst_26 {dimension_numbers = #tpu.dot_dimension_numbers<[1], [0], [0], [1], [0, 0, 1, 1], [], []>} : vector<16x8xbf16>, vector<8x128xbf16>, vector<16x128xf32> -> vector<16x128xf32>
    %c0_27 = arith.constant 0 : index
    %c0_28 = arith.constant 0 : index
    %66 = vector.load %arg12[%c0_27, %c0_28] : memref<16x1xf32, #tpu.memory_space<vmem>>, vector<16x1xf32>
    %67 = vector.broadcast %66 : vector<16x1xf32> to vector<16x128xf32>
    %68 = arith.addf %65, %67 : vector<16x128xf32>
    %69 = arith.truncf %68 : vector<16x128xf32> to vector<16x128xbf16>
    %c0_29 = arith.constant 0 : index
    %c0_30 = arith.constant 0 : index
    %70 = vector.load %arg13[%c0_29, %c0_30] : memref<128x512xbf16, #tpu.memory_space<vmem>>, vector<128x512xbf16>
    %cst_31 = arith.constant dense<0.000000e+00> : vector<16x512xf32>
    %71 = tpu.matmul %69, %70, %cst_31 {dimension_numbers = #tpu.dot_dimension_numbers<[1], [0], [0], [1], [0, 0, 1, 1], [], []>} : vector<16x128xbf16>, vector<128x512xbf16>, vector<16x512xf32> -> vector<16x512xf32>
    %cst_32 = arith.constant 0.000000e+00 : f32
    %72 = vector.broadcast %cst_32 : f32 to vector<16x512xf32>
    %73 = arith.subf %72, %71 : vector<16x512xf32>
    %74 = math.exp %73 : vector<16x512xf32>
    %cst_33 = arith.constant 1.000000e+00 : f32
    %75 = vector.broadcast %cst_33 : f32 to vector<16x512xf32>
    %76 = arith.addf %75, %74 : vector<16x512xf32>
    %77 = tpu.reciprocal %76 : vector<16x512xf32> -> vector<16x512xf32>
    %c0_34 = arith.constant 0 : index
    %c0_35 = arith.constant 0 : index
    %78 = vector.load %arg4[%c0_34, %c0_35] : memref<16x144xbf16, #tpu.memory_space<vmem>>, vector<16x144xbf16>
    %c17_i32 = arith.constant 17 : i32
    %79 = tpu.dynamic_rotate %9 by %c17_i32 dim 1 : vector<16x512xf32>, i32 -> vector<16x512xf32>
    %c0_36 = arith.constant 0 : index
    %c0_37 = arith.constant 0 : index
    %80 = vector.load %arg14[%c0_36, %c0_37] : memref<9x512xf32, #tpu.memory_space<vmem>>, vector<1x512xf32>
    %81 = vector.broadcast %80 : vector<1x512xf32> to vector<16x512xf32>
    %82 = arith.mulf %79, %81 : vector<16x512xf32>
    %83 = arith.truncf %82 : vector<16x512xf32> to vector<16x512xbf16>
    %c16_i32 = arith.constant 16 : i32
    %84 = tpu.dynamic_rotate %9 by %c16_i32 dim 1 : vector<16x512xf32>, i32 -> vector<16x512xf32>
    %c1_38 = arith.constant 1 : index
    %c0_39 = arith.constant 0 : index
    %85 = vector.load %arg14[%c1_38, %c0_39] : memref<9x512xf32, #tpu.memory_space<vmem>>, vector<1x512xf32>
    %86 = vector.broadcast %85 : vector<1x512xf32> to vector<16x512xf32>
    %87 = arith.mulf %84, %86 : vector<16x512xf32>
    %88 = arith.truncf %87 : vector<16x512xf32> to vector<16x512xbf16>
    %c15_i32 = arith.constant 15 : i32
    %89 = tpu.dynamic_rotate %9 by %c15_i32 dim 1 : vector<16x512xf32>, i32 -> vector<16x512xf32>
    %c2_40 = arith.constant 2 : index
    %c0_41 = arith.constant 0 : index
    %90 = vector.load %arg14[%c2_40, %c0_41] : memref<9x512xf32, #tpu.memory_space<vmem>>, vector<1x512xf32>
    %91 = vector.broadcast %90 : vector<1x512xf32> to vector<16x512xf32>
    %92 = arith.mulf %89, %91 : vector<16x512xf32>
    %93 = arith.truncf %92 : vector<16x512xf32> to vector<16x512xbf16>
    %c1_i32_42 = arith.constant 1 : i32
    %94 = tpu.dynamic_rotate %9 by %c1_i32_42 dim 1 : vector<16x512xf32>, i32 -> vector<16x512xf32>
    %c3_43 = arith.constant 3 : index
    %c0_44 = arith.constant 0 : index
    %95 = vector.load %arg14[%c3_43, %c0_44] : memref<9x512xf32, #tpu.memory_space<vmem>>, vector<1x512xf32>
    %96 = vector.broadcast %95 : vector<1x512xf32> to vector<16x512xf32>
    %97 = arith.mulf %94, %96 : vector<16x512xf32>
    %98 = arith.truncf %97 : vector<16x512xf32> to vector<16x512xbf16>
    %99 = arith.truncf %9 : vector<16x512xf32> to vector<16x512xbf16>
    %c511_i32 = arith.constant 511 : i32
    %100 = tpu.dynamic_rotate %9 by %c511_i32 dim 1 : vector<16x512xf32>, i32 -> vector<16x512xf32>
    %c5_45 = arith.constant 5 : index
    %c0_46 = arith.constant 0 : index
    %101 = vector.load %arg14[%c5_45, %c0_46] : memref<9x512xf32, #tpu.memory_space<vmem>>, vector<1x512xf32>
    %102 = vector.broadcast %101 : vector<1x512xf32> to vector<16x512xf32>
    %103 = arith.mulf %100, %102 : vector<16x512xf32>
    %104 = arith.truncf %103 : vector<16x512xf32> to vector<16x512xbf16>
    %c497_i32 = arith.constant 497 : i32
    %105 = tpu.dynamic_rotate %9 by %c497_i32 dim 1 : vector<16x512xf32>, i32 -> vector<16x512xf32>
    %c6_47 = arith.constant 6 : index
    %c0_48 = arith.constant 0 : index
    %106 = vector.load %arg14[%c6_47, %c0_48] : memref<9x512xf32, #tpu.memory_space<vmem>>, vector<1x512xf32>
    %107 = vector.broadcast %106 : vector<1x512xf32> to vector<16x512xf32>
    %108 = arith.mulf %105, %107 : vector<16x512xf32>
    %109 = arith.truncf %108 : vector<16x512xf32> to vector<16x512xbf16>
    %c496_i32 = arith.constant 496 : i32
    %110 = tpu.dynamic_rotate %9 by %c496_i32 dim 1 : vector<16x512xf32>, i32 -> vector<16x512xf32>
    %c7_49 = arith.constant 7 : index
    %c0_50 = arith.constant 0 : index
    %111 = vector.load %arg14[%c7_49, %c0_50] : memref<9x512xf32, #tpu.memory_space<vmem>>, vector<1x512xf32>
    %112 = vector.broadcast %111 : vector<1x512xf32> to vector<16x512xf32>
    %113 = arith.mulf %110, %112 : vector<16x512xf32>
    %114 = arith.truncf %113 : vector<16x512xf32> to vector<16x512xbf16>
    %c495_i32 = arith.constant 495 : i32
    %115 = tpu.dynamic_rotate %9 by %c495_i32 dim 1 : vector<16x512xf32>, i32 -> vector<16x512xf32>
    %c8_51 = arith.constant 8 : index
    %c0_52 = arith.constant 0 : index
    %116 = vector.load %arg14[%c8_51, %c0_52] : memref<9x512xf32, #tpu.memory_space<vmem>>, vector<1x512xf32>
    %117 = vector.broadcast %116 : vector<1x512xf32> to vector<16x512xf32>
    %118 = arith.mulf %115, %117 : vector<16x512xf32>
    %119 = arith.truncf %118 : vector<16x512xf32> to vector<16x512xbf16>
    %120 = tpu.concatenate %83, %88, %93, %98, %99, %104, %109, %114, %119 in 0 : vector<16x512xbf16>, vector<16x512xbf16>, vector<16x512xbf16>, vector<16x512xbf16>, vector<16x512xbf16>, vector<16x512xbf16>, vector<16x512xbf16>, vector<16x512xbf16>, vector<16x512xbf16> -> vector<144x512xbf16>
    %cst_53 = arith.constant dense<0.000000e+00> : vector<16x512xf32>
    %121 = tpu.matmul %78, %120, %cst_53 {dimension_numbers = #tpu.dot_dimension_numbers<[1], [0], [0], [1], [0, 0, 1, 1], [], []>} : vector<16x144xbf16>, vector<144x512xbf16>, vector<16x512xf32> -> vector<16x512xf32>
    %c0_54 = arith.constant 0 : index
    %c0_55 = arith.constant 0 : index
    %122 = vector.load %arg5[%c0_54, %c0_55] : memref<16x1xf32, #tpu.memory_space<vmem>>, vector<16x1xf32>
    %123 = vector.broadcast %122 : vector<16x1xf32> to vector<16x512xf32>
    %124 = arith.addf %121, %123 : vector<16x512xf32>
    %cst_56 = arith.constant 0.000000e+00 : f32
    %125 = vector.broadcast %cst_56 : f32 to vector<16x512xf32>
    %126 = arith.maximumf %124, %125 : vector<16x512xf32>
    %127 = arith.mulf %126, %77 : vector<16x512xf32>
    %c0_57 = arith.constant 0 : index
    %c0_58 = arith.constant 0 : index
    %128 = vector.load %arg6[%c0_57, %c0_58] : memref<32x16xbf16, #tpu.memory_space<vmem>>, vector<32x16xbf16>
    %129 = arith.truncf %127 : vector<16x512xf32> to vector<16x512xbf16>
    %cst_59 = arith.constant dense<0.000000e+00> : vector<32x512xf32>
    %130 = tpu.matmul %128, %129, %cst_59 {dimension_numbers = #tpu.dot_dimension_numbers<[1], [0], [0], [1], [0, 0, 1, 1], [], []>} : vector<32x16xbf16>, vector<16x512xbf16>, vector<32x512xf32> -> vector<32x512xf32>
    %c0_60 = arith.constant 0 : index
    %c0_61 = arith.constant 0 : index
    %131 = vector.load %arg7[%c0_60, %c0_61] : memref<32x1xf32, #tpu.memory_space<vmem>>, vector<32x1xf32>
    %132 = vector.broadcast %131 : vector<32x1xf32> to vector<32x512xf32>
    %133 = arith.addf %130, %132 : vector<32x512xf32>
    %c0_62 = arith.constant 0 : index
    %c0_63 = arith.constant 0 : index
    %134 = vector.load %arg16[%c0_62, %c0_63] : memref<32x512xf32, #tpu.memory_space<vmem>>, vector<32x512xf32>
    tpu.vector_store %arg16[%c0_62, %c0_63], %133 {strides = array<i32>} : memref<32x512xf32, #tpu.memory_space<vmem>>, vector<32x512xf32>,
    return
  }
  func.func @transform_0(%arg0: i32) -> (i32, i32) {
    %c0_i32 = arith.constant 0 : i32
    %c0_i32_0 = arith.constant 0 : i32
    %c0_i32_1 = arith.constant 0 : i32
    return %c0_i32, %c0_i32_0 : i32, i32
  }
  func.func @transform_1(%arg0: i32) -> (i32, i32) {
    %c0_i32 = arith.constant 0 : i32
    %c0_i32_0 = arith.constant 0 : i32
    %c0_i32_1 = arith.constant 0 : i32
    return %c0_i32, %c0_i32_0 : i32, i32
  }
  func.func @transform_2(%arg0: i32) -> (i32, i32) {
    %c0_i32 = arith.constant 0 : i32
    %c0_i32_0 = arith.constant 0 : i32
    %c0_i32_1 = arith.constant 0 : i32
    return %c0_i32, %c0_i32_0 : i32, i32
  }
  func.func @transform_3(%arg0: i32) -> (i32, i32) {
    %c0_i32 = arith.constant 0 : i32
    %c0_i32_0 = arith.constant 0 : i32
    %c0_i32_1 = arith.constant 0 : i32
    return %c0_i32, %c0_i32_0 : i32, i32
  }
  func.func @transform_4(%arg0: i32) -> (i32, i32) {
    %c0_i32 = arith.constant 0 : i32
    %c0_i32_0 = arith.constant 0 : i32
    %c0_i32_1 = arith.constant 0 : i32
    return %c0_i32, %c0_i32_0 : i32, i32
  }
  func.func @transform_5(%arg0: i32) -> (i32, i32) {
    %c0_i32 = arith.constant 0 : i32
    %c0_i32_0 = arith.constant 0 : i32
    %c0_i32_1 = arith.constant 0 : i32
    return %c0_i32, %c0_i32_0 : i32, i32
  }
  func.func @transform_6(%arg0: i32) -> (i32, i32) {
    %c0_i32 = arith.constant 0 : i32
    %c0_i32_0 = arith.constant 0 : i32
    %c0_i32_1 = arith.constant 0 : i32
    return %c0_i32, %c0_i32_0 : i32, i32
  }
  func.func @transform_7(%arg0: i32) -> (i32, i32) {
    %c0_i32 = arith.constant 0 : i32
    %c0_i32_0 = arith.constant 0 : i32
    %c0_i32_1 = arith.constant 0 : i32
    return %c0_i32, %c0_i32_0 : i32, i32
  }
  func.func @transform_8(%arg0: i32) -> (i32, i32) {
    %c0_i32 = arith.constant 0 : i32
    %c0_i32_0 = arith.constant 0 : i32
    %c0_i32_1 = arith.constant 0 : i32
    return %c0_i32, %c0_i32_0 : i32, i32
  }
  func.func @transform_9(%arg0: i32) -> (i32, i32) {
    %c0_i32 = arith.constant 0 : i32
    %c0_i32_0 = arith.constant 0 : i32
    %c0_i32_1 = arith.constant 0 : i32
    return %c0_i32, %c0_i32_0 : i32, i32
  }
  func.func @transform_10(%arg0: i32) -> (i32, i32) {
    %c0_i32 = arith.constant 0 : i32
    %c0_i32_0 = arith.constant 0 : i32
    %c0_i32_1 = arith.constant 0 : i32
    return %c0_i32, %c0_i32_0 : i32, i32
  }
  func.func @transform_11(%arg0: i32) -> (i32, i32) {
    %c0_i32 = arith.constant 0 : i32
    %c0_i32_0 = arith.constant 0 : i32
    %c0_i32_1 = arith.constant 0 : i32
    return %c0_i32, %c0_i32_0 : i32, i32
  }
  func.func @transform_12(%arg0: i32) -> (i32, i32) {
    %c0_i32 = arith.constant 0 : i32
    %c0_i32_0 = arith.constant 0 : i32
    %c0_i32_1 = arith.constant 0 : i32
    return %c0_i32, %c0_i32_0 : i32, i32
  }
  func.func @transform_13(%arg0: i32) -> (i32, i32) {
    %c0_i32 = arith.constant 0 : i32
    %c0_i32_0 = arith.constant 0 : i32
    %c0_i32_1 = arith.constant 0 : i32
    return %c0_i32, %c0_i32_0 : i32, i32
  }
  func.func @transform_14(%arg0: i32) -> (i32, i32) {
    %c0_i32 = arith.constant 0 : i32
    %c0_i32_0 = arith.constant 0 : i32
    %c0_i32_1 = arith.constant 0 : i32
    return %c0_i32, %c0_i32_0 : i32, i32
  }
  func.func @transform_15(%arg0: i32) -> (i32, i32) {
    %c0_i32 = arith.constant 0 : i32
    %c0_i32_0 = arith.constant 0 : i32
    %c0_i32_1 = arith.constant 0 : i32
    return %c0_i32, %c0_i32_0 : i32, i32
  }
}

</mosaic_0001>

<llo_original>
// kernel: tpu_custom_call.1
$region0: #{tpu_custom_call.1}
  #allocation0 [shape = 'u32[]', space=smem, size = 0x4, offset = 0x4, fixed_abs, tag = 'smem constant byte address 0x4 - core index']
  #allocation1 [shape = 'u32[72,128]{1,0:T(1,128)}', space=vmem, size = 0x9000, scoped, tag = 'internal scratch']
  %s0 = inlined_call_operand.hbm [shape: f32[32,512], index: 0, kind: input, shape index: {}]
  %s1 = inlined_call_operand.vmem [shape: bf16[24,32], index: 1, kind: input, shape index: {}]
  %s2 = inlined_call_operand.vmem [shape: f32[24,1], index: 2, kind: input, shape index: {}]
  %s3 = inlined_call_operand.vmem [shape: bf16[16,144], index: 3, kind: input, shape index: {}]
  %s4 = inlined_call_operand.vmem [shape: f32[16,1], index: 4, kind: input, shape index: {}]
  %s5 = inlined_call_operand.vmem [shape: bf16[32,16], index: 5, kind: input, shape index: {}]
  %s6 = inlined_call_operand.vmem [shape: f32[32,1], index: 6, kind: input, shape index: {}]
  %s7 = inlined_call_operand.hbm [shape: bf16[512,128], index: 7, kind: input, shape index: {}]
  %s8 = inlined_call_operand.vmem [shape: bf16[8,72], index: 8, kind: input, shape index: {}]
  %s9 = inlined_call_operand.vmem [shape: f32[8,1], index: 9, kind: input, shape index: {}]
  %s10 = inlined_call_operand.vmem [shape: bf16[16,8], index: 10, kind: input, shape index: {}]
  %s11 = inlined_call_operand.vmem [shape: f32[16,1], index: 11, kind: input, shape index: {}]
  %s12 = inlined_call_operand.hbm [shape: bf16[128,512], index: 12, kind: input, shape index: {}]
  %s13 = inlined_call_operand.hbm [shape: f32[9,512], index: 13, kind: input, shape index: {}]
  %s14 = inlined_call_operand.vmem [shape: f32[9,128], index: 14, kind: input, shape index: {}]
  %s15 = inlined_call_operand.hbm [shape: f32[32,512], index: 15, kind: output, shape index: {}]
  %s16 = sld [smem:[#allocation0]]
  $region86: #{tpu_custom_call.1} parent=0
    _
  %s18 = ssub.s32 1, %s16
  %s19 = scalar_select 0, %s18, %s16
  $region1: #{tpu_custom_call.1} parent=0
    #allocation2 [shape = 'u8[65536]{0}', space=vmem, size = 0x10000, scoped, tag = 'input window, operand 0, single buffered']
    #allocation3 [shape = 's32[1]{0}', space=sflag, size = 0x4, scoped, tag = 'scoped memory for tpu_custom_call.1']
    #allocation4 [shape = 's32[1]{0}', space=sflag, size = 0x4, scoped, tag = 'scoped memory for tpu_custom_call.1']
    #allocation5 [shape = 'u8[131072]{0}', space=vmem, size = 0x20000, scoped, tag = 'input window, operand 7, single buffered']
    #allocation6 [shape = 's32[1]{0}', space=sflag, size = 0x4, scoped, tag = 'scoped memory for tpu_custom_call.1']
    #allocation7 [shape = 'u8[131072]{0}', space=vmem, size = 0x20000, scoped, tag = 'input window, operand 12, single buffered']
    #allocation8 [shape = 'u8[32768]{0}', space=vmem, size = 0x8000, scoped, tag = 'input window, operand 13, single buffered']
    #allocation9 [shape = 's32[1]{0}', space=sflag, size = 0x4, scoped, tag = 'scoped memory for tpu_custom_call.1']
    #allocation10 [shape = 'u8[65536]{0}', space=vmem, size = 0x10000, scoped, tag = 'output window, operand 0, single buffered']
    %20 = vsyncpa [#allocation3], 0
    %21 = vsyncpa [#allocation6], 0
    %22 = vsyncpa [#allocation9], 0
    %23 = vsyncpa [#allocation4], 0
    // Predicated region
    $region2: #{tpu_custom_call.1} parent=1 // pred_check
      _
    $region3: #{tpu_custom_call.1} parent=1 // pred_check_branch
      %25 = sbr.rel (0) target = $region5
    $region4: #{tpu_custom_call.1} parent=1 // pred_region
      %27 = vsyncadd [#allocation3], 0
      %s28 = sshll.u32 %s0, 4
      %s29 = int_to_ptr.hbm [resolvable:$true] %s28
      %s30 = sshll.u32 [#allocation2], 4
      %s31 = int_to_ptr.vmem [resolvable:$true] %s30
      %36 = dma.hbm_to_vmem [thread:$0]  %s29, 2048, %s31, [#allocation3], 512, 512, 32
    $region5: #{tpu_custom_call.1} parent=1 // pred_fallthru
      _
    // Predicated region
    $region6: #{tpu_custom_call.1} parent=1 // pred_check
      _
    $region7: #{tpu_custom_call.1} parent=1 // pred_check_branch
      %38 = sbr.rel (0) target = $region9
    $region8: #{tpu_custom_call.1} parent=1 // pred_region
      _
    $region9: #{tpu_custom_call.1} parent=1 // pred_fallthru
      _
    // Predicated region
    $region10: #{tpu_custom_call.1} parent=1 // pred_check
      _
    $region11: #{tpu_custom_call.1} parent=1 // pred_check_branch
      %40 = sbr.rel (0) target = $region13
    $region12: #{tpu_custom_call.1} parent=1 // pred_region
      _
    $region13: #{tpu_custom_call.1} parent=1 // pred_fallthru
      _
    // Predicated region
    $region14: #{tpu_custom_call.1} parent=1 // pred_check
      _
    $region15: #{tpu_custom_call.1} parent=1 // pred_check_branch
      %42 = sbr.rel (0) target = $region17
    $region16: #{tpu_custom_call.1} parent=1 // pred_region
      _
    $region17: #{tpu_custom_call.1} parent=1 // pred_fallthru
      _
    // Predicated region
    $region18: #{tpu_custom_call.1} parent=1 // pred_check
      _
    $region19: #{tpu_custom_call.1} parent=1 // pred_check_branch
      %44 = sbr.rel (0) target = $region21
    $region20: #{tpu_custom_call.1} parent=1 // pred_region
      _
    $region21: #{tpu_custom_call.1} parent=1 // pred_fallthru
      _
    // Predicated region
    $region22: #{tpu_custom_call.1} parent=1 // pred_check
      _
    $region23: #{tpu_custom_call.1} parent=1 // pred_check_branch
      %46 = sbr.rel (0) target = $region25
    $region24: #{tpu_custom_call.1} parent=1 // pred_region
      _
    $region25: #{tpu_custom_call.1} parent=1 // pred_fallthru
      _
    // Predicated region
    $region26: #{tpu_custom_call.1} parent=1 // pred_check
      _
    $region27: #{tpu_custom_call.1} parent=1 // pred_check_branch
      %48 = sbr.rel (0) target = $region29
    $region28: #{tpu_custom_call.1} parent=1 // pred_region
      _
    $region29: #{tpu_custom_call.1} parent=1 // pred_fallthru
      _
    // Predicated region
    $region30: #{tpu_custom_call.1} parent=1 // pred_check
      _
    $region31: #{tpu_custom_call.1} parent=1 // pred_check_branch
      %50 = sbr.rel (0) target = $region33
    $region32: #{tpu_custom_call.1} parent=1 // pred_region
      %52 = vsyncadd [#allocation6], 0
      %s53 = sshll.u32 %s7, 4
      %s54 = int_to_ptr.hbm [resolvable:$true] %s53
      %s55 = sshll.u32 [#allocation5], 4
      %s56 = int_to_ptr.vmem [resolvable:$true] %s55
      %61 = dma.hbm_to_vmem [thread:$0]  %s54, 4096, %s56, [#allocation6], 64, 64, 4
    $region33: #{tpu_custom_call.1} parent=1 // pred_fallthru
      _
    // Predicated region
    $region34: #{tpu_custom_call.1} parent=1 // pred_check
      _
    $region35: #{tpu_custom_call.1} parent=1 // pred_check_branch
      %63 = sbr.rel (0) target = $region37
    $region36: #{tpu_custom_call.1} parent=1 // pred_region
      _
    $region37: #{tpu_custom_call.1} parent=1 // pred_fallthru
      _
    // Predicated region
    $region38: #{tpu_custom_call.1} parent=1 // pred_check
      _
    $region39: #{tpu_custom_call.1} parent=1 // pred_check_branch
      %65 = sbr.rel (0) target = $region41
    $region40: #{tpu_custom_call.1} parent=1 // pred_region
      _
    $region41: #{tpu_custom_call.1} parent=1 // pred_fallthru
      _
    // Predicated region
    $region42: #{tpu_custom_call.1} parent=1 // pred_check
      _
    $region43: #{tpu_custom_call.1} parent=1 // pred_check_branch
      %67 = sbr.rel (0) target = $region45
    $region44: #{tpu_custom_call.1} parent=1 // pred_region
      _
    $region45: #{tpu_custom_call.1} parent=1 // pred_fallthru
      _
    // Predicated region
    $region46: #{tpu_custom_call.1} parent=1 // pred_check
      _
    $region47: #{tpu_custom_call.1} parent=1 // pred_check_branch
      %69 = sbr.rel (0) target = $region49
    $region48: #{tpu_custom_call.1} parent=1 // pred_region
      _
    $region49: #{tpu_custom_call.1} parent=1 // pred_fallthru
      _
    // Predicated region
    $region50: #{tpu_custom_call.1} parent=1 // pred_check
      _
    $region51: #{tpu_custom_call.1} parent=1 // pred_check_branch
      %71 = sbr.rel (0) target = $region53
    $region52: #{tpu_custom_call.1} parent=1 // pred_region
      %73 = vsyncadd [#allocation6], 0
      %s74 = sshll.u32 %s12, 4
      %s75 = int_to_ptr.hbm [resolvable:$true] %s74
      %s76 = sshll.u32 [#allocation7], 4
      %s77 = int_to_ptr.vmem [resolvable:$true] %s76
      %82 = dma.hbm_to_vmem [thread:$0]  %s75, 4096, %s77, [#allocation6], 256, 256, 16
    $region53: #{tpu_custom_call.1} parent=1 // pred_fallthru
      _
    // Predicated region
    $region54: #{tpu_custom_call.1} parent=1 // pred_check
      _
    $region55: #{tpu_custom_call.1} parent=1 // pred_check_branch
      %84 = sbr.rel (0) target = $region57
    $region56: #{tpu_custom_call.1} parent=1 // pred_region
      %86 = vsyncadd [#allocation9], 0
      %s87 = sshll.u32 %s13, 4
      %s88 = int_to_ptr.hbm [resolvable:$true] %s87
      %s89 = sshll.u32 [#allocation8], 4
      %s90 = int_to_ptr.vmem [resolvable:$true] %s89
      %95 = dma.hbm_to_vmem [thread:$0]  %s88, 1024, %s90, [#allocation9], 512, 512, 32
    $region57: #{tpu_custom_call.1} parent=1 // pred_fallthru
      _
    // Predicated region
    $region58: #{tpu_custom_call.1} parent=1 // pred_check
      _
    $region59: #{tpu_custom_call.1} parent=1 // pred_check_branch
      %97 = sbr.rel (0) target = $region61
    $region60: #{tpu_custom_call.1} parent=1 // pred_region
      _
    $region61: #{tpu_custom_call.1} parent=1 // pred_fallthru
      _
    // Predicated region
    $region62: #{tpu_custom_call.1} parent=1 // pred_check
      _
    $region63: #{tpu_custom_call.1} parent=1 // pred_check_branch
      %99 = sbr.rel (0) target = $region65
    $region64: #{tpu_custom_call.1} parent=1 // pred_region
      %101 = dma.done [#allocation3], 2048
    $region65: #{tpu_custom_call.1} parent=1 // pred_fallthru
      _
    // Predicated region
    $region66: #{tpu_custom_call.1} parent=1 // pred_check
      _
    $region67: #{tpu_custom_call.1} parent=1 // pred_check_branch
      %103 = sbr.rel (0) target = $region69
    $region68: #{tpu_custom_call.1} parent=1 // pred_region
      %105 = dma.done [#allocation6], 4096
    $region69: #{tpu_custom_call.1} parent=1 // pred_fallthru
      _
    // Predicated region
    $region70: #{tpu_custom_call.1} parent=1 // pred_check
      _
    $region71: #{tpu_custom_call.1} parent=1 // pred_check_branch
      %107 = sbr.rel (0) target = $region73
    $region72: #{tpu_custom_call.1} parent=1 // pred_region
      %109 = dma.done [#allocation6], 4096
    $region73: #{tpu_custom_call.1} parent=1 // pred_fallthru
      _
    // Predicated region
    $region74: #{tpu_custom_call.1} parent=1 // pred_check
      _
    $region75: #{tpu_custom_call.1} parent=1 // pred_check_branch
      %111 = sbr.rel (0) target = $region77
    $region76: #{tpu_custom_call.1} parent=1 // pred_region
      %113 = dma.done [#allocation9], 1024
    $region77: #{tpu_custom_call.1} parent=1 // pred_fallthru
      _
    %v115 = vld [vmem:[#allocation2] sm:$0xff]
    %v116 = vld [vmem:[#allocation2 + $0x8] sm:$0xff]
    %v117 = vld [vmem:[#allocation2 + $0x10] sm:$0xff]
    %v118 = vld [vmem:[#allocation2 + $0x18] sm:$0xff]
    %v119 = vld [vmem:[#allocation2 + $0x20] sm:$0xff]
    %v120 = vld [vmem:[#allocation2 + $0x28] sm:$0xff]
    %v121 = vld [vmem:[#allocation2 + $0x30] sm:$0xff]
    %v122 = vld [vmem:[#allocation2 + $0x38] sm:$0xff]
    %v123 = vld [vmem:[#allocation2 + $0x40] sm:$0xff]
    %v124 = vld [vmem:[#allocation2 + $0x48] sm:$0xff]
    %v125 = vld [vmem:[#allocation2 + $0x50] sm:$0xff]
    %v126 = vld [vmem:[#allocation2 + $0x58] sm:$0xff]
    %v127 = vld [vmem:[#allocation2 + $0x60] sm:$0xff]
    %v128 = vld [vmem:[#allocation2 + $0x68] sm:$0xff]
    %v129 = vld [vmem:[#allocation2 + $0x70] sm:$0xff]
    %v130 = vld [vmem:[#allocation2 + $0x78] sm:$0xff]
    %v131 = vpack.c.bf16 %v119, %v115
    %v132 = vpack.c.bf16 %v120, %v116
    %v133 = vpack.c.bf16 %v121, %v117
    %v134 = vpack.c.bf16 %v122, %v118
    %v135 = vpack.c.bf16 %v127, %v123
    %v136 = vpack.c.bf16 %v128, %v124
    %v137 = vpack.c.bf16 %v129, %v125
    %v138 = vpack.c.bf16 %v130, %v126
    %v139 = vld [vmem:[%s1] sm:$0xf]
    %v140 = vld [vmem:[%s1 + $0x4] sm:$0xf]
    %v141 = vld [vmem:[%s1 + $0x8] sm:$0xf]
    %v142 = vld [vmem:[%s2] sm:$0xff]
    %v143 = vld [vmem:[%s2 + $0x8] sm:$0xff]
    %v144 = vld [vmem:[%s2 + $0x10] sm:$0xff]
    %146 = vset.pattern.permute.xlu0 0
    %147 = vperm.xlu0 %146, %v142
    %v148 = vpop.permute.xlu0 %147
    %151 = vset.pattern.permute.xlu0 0
    %152 = vperm.xlu0 %151, %v143
    %v153 = vpop.permute.xlu0 %152
    %156 = vset.pattern.permute.xlu0 0
    %157 = vperm.xlu0 %156, %v144
    %v158 = vpop.permute.xlu0 %157
    %v163 = vunpack.c.l.b16 %v139
    %v164 = vunpack.c.l.b16 %v140
    %v165 = vunpack.c.l.b16 %v141
    %v166 = vpack.c.b16 %v164, %v163
    %v167 = vpack.c.b16 %v165, %v165
    %vm168 = vcmask 261120
    %v170 = vsel %vm168, %v166, 0
    %v173 = vsel %vm168, %v167, 0
    %175 = vmatpush.bf16.msra.mxu0 0
    %176 = vmatpush.bf16.msra.mxu0 0
    %177 = vmatpush.bf16.msra.mxu0 0
    %178 = vmatpush.bf16.msra.mxu0 0
    %179 = vmatpush.bf16.msra.mxu0 0
    %180 = vmatpush.bf16.msra.mxu0 0
    %181 = vmatpush.bf16.msra.mxu0 %v135
    %182 = vmatpush.bf16.msra.mxu0 %v131
    %183 = vmatmul.bf16.gmra.mxu0 %v170
    %v184 = vpop.f32.mrf.mxu0
    %v185 = vadd.f32 %v148, %v184
    %v186 = vpop.f32.mrf.mxu0
    %v187 = vadd.f32 %v153, %v186
    %188 = vmatmul.bf16.gmra.mxu0 %v173
    %v189 = vpop.f32.mrf.mxu0
    %v190 = vadd.f32 %v158, %v189
    %v191 = vpop.f32.mrf.mxu0
    %192 = vdwg.mxu0
    %193 = vmatpush.bf16.msra.mxu0 0
    %194 = vmatpush.bf16.msra.mxu0 0
    %195 = vmatpush.bf16.msra.mxu0 0
    %196 = vmatpush.bf16.msra.mxu0 0
    %197 = vmatpush.bf16.msra.mxu0 0
    %198 = vmatpush.bf16.msra.mxu0 0
    %199 = vmatpush.bf16.msra.mxu0 %v136
    %200 = vmatpush.bf16.msra.mxu0 %v132
    %201 = vmatmul.bf16.gmra.mxu0 %v170
    %v202 = vpop.f32.mrf.mxu0
    %v203 = vadd.f32 %v148, %v202
    %v204 = vpop.f32.mrf.mxu0
    %v205 = vadd.f32 %v153, %v204
    %206 = vmatmul.bf16.gmra.mxu0 %v173
    %v207 = vpop.f32.mrf.mxu0
    %v208 = vadd.f32 %v158, %v207
    %v209 = vpop.f32.mrf.mxu0
    %210 = vdwg.mxu0
    %211 = vmatpush.bf16.msra.mxu0 0
    %212 = vmatpush.bf16.msra.mxu0 0
    %213 = vmatpush.bf16.msra.mxu0 0
    %214 = vmatpush.bf16.msra.mxu0 0
    %215 = vmatpush.bf16.msra.mxu0 0
    %216 = vmatpush.bf16.msra.mxu0 0
    %217 = vmatpush.bf16.msra.mxu0 %v137
    %218 = vmatpush.bf16.msra.mxu0 %v133
    %219 = vmatmul.bf16.gmra.mxu0 %v170
    %v220 = vpop.f32.mrf.mxu0
    %v221 = vadd.f32 %v148, %v220
    %v222 = vpop.f32.mrf.mxu0
    %v223 = vadd.f32 %v153, %v222
    %224 = vmatmul.bf16.gmra.mxu0 %v173
    %v225 = vpop.f32.mrf.mxu0
    %v226 = vadd.f32 %v158, %v225
    %v227 = vpop.f32.mrf.mxu0
    %228 = vdwg.mxu0
    %229 = vmatpush.bf16.msra.mxu0 0
    %230 = vmatpush.bf16.msra.mxu0 0
    %231 = vmatpush.bf16.msra.mxu0 0
    %232 = vmatpush.bf16.msra.mxu0 0
    %233 = vmatpush.bf16.msra.mxu0 0
    %234 = vmatpush.bf16.msra.mxu0 0
    %235 = vmatpush.bf16.msra.mxu0 %v138
    %236 = vmatpush.bf16.msra.mxu0 %v134
    %237 = vmatmul.bf16.gmra.mxu0 %v170
    %v238 = vpop.f32.mrf.mxu0
    %v239 = vadd.f32 %v148, %v238
    %v240 = vpop.f32.mrf.mxu0
    %v241 = vadd.f32 %v153, %v240
    %242 = vmatmul.bf16.gmra.mxu0 %v173
    %v243 = vpop.f32.mrf.mxu0
    %v244 = vadd.f32 %v158, %v243
    %v245 = vpop.f32.mrf.mxu0
    %246 = vdwg.mxu0
    %v247 = vmax.f32 %v185, 0.0
    %v248 = vmax.f32 %v203, 0.0
    %v249 = vmax.f32 %v221, 0.0
    %v250 = vmax.f32 %v239, 0.0
    %v251 = vmax.f32 %v187, 0.0
    %v252 = vmax.f32 %v205, 0.0
    %v253 = vmax.f32 %v223, 0.0
    %v254 = vmax.f32 %v241, 0.0
    %v255 = vmax.f32 %v190, 0.0
    %v256 = vmax.f32 %v208, 0.0
    %v257 = vmax.f32 %v226, 0.0
    %v258 = vmax.f32 %v244, 0.0
    %v259 = vpack.c.bf16 %v255, %v255
    %v260 = vpack.c.bf16 %v256, %v256
    %v261 = vpack.c.bf16 %v257, %v257
    %v262 = vpack.c.bf16 %v258, %v258
    %v263 = vld [vmem:[#allocation5] sm:$0xf]
    %v264 = vld [vmem:[#allocation5 + $0x4] sm:$0xf]
    %v265 = vld [vmem:[#allocation5 + $0x8] sm:$0xf]
    %v266 = vld [vmem:[#allocation5 + $0xc] sm:$0xf]
    %v267 = vld [vmem:[#allocation5 + $0x10] sm:$0xf]
    %v268 = vld [vmem:[#allocation5 + $0x14] sm:$0xf]
    %v269 = vld [vmem:[#allocation5 + $0x18] sm:$0xf]
    %v270 = vld [vmem:[#allocation5 + $0x1c] sm:$0xf]
    %v271 = vld [vmem:[#allocation5 + $0x20] sm:$0xf]
    %v272 = vld [vmem:[#allocation5 + $0x24] sm:$0xf]
    %v273 = vld [vmem:[#allocation5 + $0x28] sm:$0xf]
    %v274 = vld [vmem:[#allocation5 + $0x2c] sm:$0xf]
    %v275 = vld [vmem:[#allocation5 + $0x30] sm:$0xf]
    %v276 = vld [vmem:[#allocation5 + $0x34] sm:$0xf]
    %v277 = vld [vmem:[#allocation5 + $0x38] sm:$0xf]
    %v278 = vld [vmem:[#allocation5 + $0x3c] sm:$0xf]
    %v279 = vld [vmem:[#allocation5 + $0x40] sm:$0xf]
    %v280 = vld [vmem:[#allocation5 + $0x44] sm:$0xf]
    %v281 = vld [vmem:[#allocation5 + $0x48] sm:$0xf]
    %v282 = vld [vmem:[#allocation5 + $0x4c] sm:$0xf]
    %v283 = vld [vmem:[#allocation5 + $0x50] sm:$0xf]
    %v284 = vld [vmem:[#allocation5 + $0x54] sm:$0xf]
    %v285 = vld [vmem:[#allocation5 + $0x58] sm:$0xf]
    %v286 = vld [vmem:[#allocation5 + $0x5c] sm:$0xf]
    %v287 = vld [vmem:[#allocation5 + $0x60] sm:$0xf]
    %v288 = vld [vmem:[#allocation5 + $0x64] sm:$0xf]
    %v289 = vld [vmem:[#allocation5 + $0x68] sm:$0xf]
    %v290 = vld [vmem:[#allocation5 + $0x6c] sm:$0xf]
    %v291 = vld [vmem:[#allocation5 + $0x70] sm:$0xf]
    %v292 = vld [vmem:[#allocation5 + $0x74] sm:$0xf]
    %v293 = vld [vmem:[#allocation5 + $0x78] sm:$0xf]
    %v294 = vld [vmem:[#allocation5 + $0x7c] sm:$0xf]
    %v295 = vld [vmem:[#allocation5 + $0x80] sm:$0xf]
    %v296 = vld [vmem:[#allocation5 + $0x84] sm:$0xf]
    %v297 = vld [vmem:[#allocation5 + $0x88] sm:$0xf]
    %v298 = vld [vmem:[#allocation5 + $0x8c] sm:$0xf]
    %v299 = vld [vmem:[#allocation5 + $0x90] sm:$0xf]
    %v300 = vld [vmem:[#allocation5 + $0x94] sm:$0xf]
    %v301 = vld [vmem:[#allocation5 + $0x98] sm:$0xf]
    %v302 = vld [vmem:[#allocation5 + $0x9c] sm:$0xf]
    %v303 = vld [vmem:[#allocation5 + $0xa0] sm:$0xf]
    %v304 = vld [vmem:[#allocation5 + $0xa4] sm:$0xf]
    %v305 = vld [vmem:[#allocation5 + $0xa8] sm:$0xf]
    %v306 = vld [vmem:[#allocation5 + $0xac] sm:$0xf]
    %v307 = vld [vmem:[#allocation5 + $0xb0] sm:$0xf]
    %v308 = vld [vmem:[#allocation5 + $0xb4] sm:$0xf]
    %v309 = vld [vmem:[#allocation5 + $0xb8] sm:$0xf]
    %v310 = vld [vmem:[#allocation5 + $0xbc] sm:$0xf]
    %v311 = vld [vmem:[#allocation5 + $0xc0] sm:$0xf]
    %v312 = vld [vmem:[#allocation5 + $0xc4] sm:$0xf]
    %v313 = vld [vmem:[#allocation5 + $0xc8] sm:$0xf]
    %v314 = vld [vmem:[#allocation5 + $0xcc] sm:$0xf]
    %v315 = vld [vmem:[#allocation5 + $0xd0] sm:$0xf]
    %v316 = vld [vmem:[#allocation5 + $0xd4] sm:$0xf]
    %v317 = vld [vmem:[#allocation5 + $0xd8] sm:$0xf]
    %v318 = vld [vmem:[#allocation5 + $0xdc] sm:$0xf]
    %v319 = vld [vmem:[#allocation5 + $0xe0] sm:$0xf]
    %v320 = vld [vmem:[#allocation5 + $0xe4] sm:$0xf]
    %v321 = vld [vmem:[#allocation5 + $0xe8] sm:$0xf]
    %v322 = vld [vmem:[#allocation5 + $0xec] sm:$0xf]
    %v323 = vld [vmem:[#allocation5 + $0xf0] sm:$0xf]
    %v324 = vld [vmem:[#allocation5 + $0xf4] sm:$0xf]
    %v325 = vld [vmem:[#allocation5 + $0xf8] sm:$0xf]
    %v326 = vld [vmem:[#allocation5 + $0xfc] sm:$0xf]
    %v391 = vunpack.c.l.b16 %v263
    %v392 = vunpack.c.l.b16 %v264
    %v393 = vunpack.c.l.b16 %v265
    %v394 = vunpack.c.l.b16 %v266
    %v395 = vunpack.c.l.b16 %v267
    %v396 = vunpack.c.l.b16 %v268
    %v397 = vunpack.c.l.b16 %v269
    %v398 = vunpack.c.l.b16 %v270
    %v399 = vunpack.c.l.b16 %v271
    %v400 = vunpack.c.l.b16 %v272
    %v401 = vunpack.c.l.b16 %v273
    %v402 = vunpack.c.l.b16 %v274
    %v403 = vunpack.c.l.b16 %v275
    %v404 = vunpack.c.l.b16 %v276
    %v405 = vunpack.c.l.b16 %v277
    %v406 = vunpack.c.l.b16 %v278
    %v407 = vunpack.c.l.b16 %v279
    %v408 = vunpack.c.l.b16 %v280
    %v409 = vunpack.c.l.b16 %v281
    %v410 = vunpack.c.l.b16 %v282
    %v411 = vunpack.c.l.b16 %v283
    %v412 = vunpack.c.l.b16 %v284
    %v413 = vunpack.c.l.b16 %v285
    %v414 = vunpack.c.l.b16 %v286
    %v415 = vunpack.c.l.b16 %v287
    %v416 = vunpack.c.l.b16 %v288
    %v417 = vunpack.c.l.b16 %v289
    %v418 = vunpack.c.l.b16 %v290
    %v419 = vunpack.c.l.b16 %v291
    %v420 = vunpack.c.l.b16 %v292
    %v421 = vunpack.c.l.b16 %v293
    %v422 = vunpack.c.l.b16 %v294
    %v423 = vunpack.c.l.b16 %v295
    %v424 = vunpack.c.l.b16 %v296
    %v425 = vunpack.c.l.b16 %v297
    %v426 = vunpack.c.l.b16 %v298
    %v427 = vunpack.c.l.b16 %v299
    %v428 = vunpack.c.l.b16 %v300
    %v429 = vunpack.c.l.b16 %v301
    %v430 = vunpack.c.l.b16 %v302
    %v431 = vunpack.c.l.b16 %v303
    %v432 = vunpack.c.l.b16 %v304
    %v433 = vunpack.c.l.b16 %v305
    %v434 = vunpack.c.l.b16 %v306
    %v435 = vunpack.c.l.b16 %v307
    %v436 = vunpack.c.l.b16 %v308
    %v437 = vunpack.c.l.b16 %v309
    %v438 = vunpack.c.l.b16 %v310
    %v439 = vunpack.c.l.b16 %v311
    %v440 = vunpack.c.l.b16 %v312
    %v441 = vunpack.c.l.b16 %v313
    %v442 = vunpack.c.l.b16 %v314
    %v443 = vunpack.c.l.b16 %v315
    %v444 = vunpack.c.l.b16 %v316
    %v445 = vunpack.c.l.b16 %v317
    %v446 = vunpack.c.l.b16 %v318
    %v447 = vunpack.c.l.b16 %v319
    %v448 = vunpack.c.l.b16 %v320
    %v449 = vunpack.c.l.b16 %v321
    %v450 = vunpack.c.l.b16 %v322
    %v451 = vunpack.c.l.b16 %v323
    %v452 = vunpack.c.l.b16 %v324
    %v453 = vunpack.c.l.b16 %v325
    %v454 = vunpack.c.l.b16 %v326
    %v455 = vpack.c.b16 %v392, %v391
    %v456 = vpack.c.b16 %v394, %v393
    %v457 = vpack.c.b16 %v396, %v395
    %v458 = vpack.c.b16 %v398, %v397
    %v459 = vpack.c.b16 %v400, %v399
    %v460 = vpack.c.b16 %v402, %v401
    %v461 = vpack.c.b16 %v404, %v403
    %v462 = vpack.c.b16 %v406, %v405
    %v463 = vpack.c.b16 %v408, %v407
    %v464 = vpack.c.b16 %v410, %v409
    %v465 = vpack.c.b16 %v412, %v411
    %v466 = vpack.c.b16 %v414, %v413
    %v467 = vpack.c.b16 %v416, %v415
    %v468 = vpack.c.b16 %v418, %v417
    %v469 = vpack.c.b16 %v420, %v419
    %v470 = vpack.c.b16 %v422, %v421
    %v471 = vpack.c.b16 %v424, %v423
    %v472 = vpack.c.b16 %v426, %v425
    %v473 = vpack.c.b16 %v428, %v427
    %v474 = vpack.c.b16 %v430, %v429
    %v475 = vpack.c.b16 %v432, %v431
    %v476 = vpack.c.b16 %v434, %v433
    %v477 = vpack.c.b16 %v436, %v435
    %v478 = vpack.c.b16 %v438, %v437
    %v479 = vpack.c.b16 %v440, %v439
    %v480 = vpack.c.b16 %v442, %v441
    %v481 = vpack.c.b16 %v444, %v443
    %v482 = vpack.c.b16 %v446, %v445
    %v483 = vpack.c.b16 %v448, %v447
    %v484 = vpack.c.b16 %v450, %v449
    %v485 = vpack.c.b16 %v452, %v451
    %v486 = vpack.c.b16 %v454, %v453
    %519 = vmatpush.bf16.msra.mxu0 %v462
    %520 = vmatpush.bf16.msra.mxu0 %v461
    %521 = vmatpush.bf16.msra.mxu0 %v460
    %522 = vmatpush.bf16.msra.mxu0 %v459
    %523 = vmatpush.bf16.msra.mxu0 %v458
    %524 = vmatpush.bf16.msra.mxu0 %v457
    %525 = vmatpush.bf16.msra.mxu0 %v456
    %526 = vmatpush.bf16.msra.mxu0 %v455
    %527 = vmatmul.bf16.gmra.mxu0 %v259
    %v528 = vpop.f32.mrf.mxu0
    %v529 = vadd.f32 0.0, %v528
    %v530 = vpop.f32.mrf.mxu0
    %531 = vdwg.mxu0
    %532 = vmatpush.bf16.msra.mxu0 %v470
    %533 = vmatpush.bf16.msra.mxu0 %v469
    %534 = vmatpush.bf16.msra.mxu0 %v468
    %535 = vmatpush.bf16.msra.mxu0 %v467
    %536 = vmatpush.bf16.msra.mxu0 %v466
    %537 = vmatpush.bf16.msra.mxu0 %v465
    %538 = vmatpush.bf16.msra.mxu0 %v464
    %539 = vmatpush.bf16.msra.mxu0 %v463
    %540 = vmatmul.bf16.gmra.mxu0 %v260
    %v541 = vpop.f32.mrf.mxu0
    %v542 = vadd.f32 %v529, %v541
    %v543 = vpop.f32.mrf.mxu0
    %544 = vdwg.mxu0
    %545 = vmatpush.bf16.msra.mxu0 %v478
    %546 = vmatpush.bf16.msra.mxu0 %v477
    %547 = vmatpush.bf16.msra.mxu0 %v476
    %548 = vmatpush.bf16.msra.mxu0 %v475
    %549 = vmatpush.bf16.msra.mxu0 %v474
    %550 = vmatpush.bf16.msra.mxu0 %v473
    %551 = vmatpush.bf16.msra.mxu0 %v472
    %552 = vmatpush.bf16.msra.mxu0 %v471
    %553 = vmatmul.bf16.gmra.mxu0 %v261
    %v554 = vpop.f32.mrf.mxu0
    %v555 = vadd.f32 %v542, %v554
    %v556 = vpop.f32.mrf.mxu0
    %557 = vdwg.mxu0
    %558 = vmatpush.bf16.msra.mxu0 %v486
    %559 = vmatpush.bf16.msra.mxu0 %v485
    %560 = vmatpush.bf16.msra.mxu0 %v484
    %561 = vmatpush.bf16.msra.mxu0 %v483
    %562 = vmatpush.bf16.msra.mxu0 %v482
    %563 = vmatpush.bf16.msra.mxu0 %v481
    %564 = vmatpush.bf16.msra.mxu0 %v480
    %565 = vmatpush.bf16.msra.mxu0 %v479
    %566 = vmatmul.bf16.gmra.mxu0 %v262
    %v567 = vpop.f32.mrf.mxu0
    %v568 = vadd.f32 %v555, %v567
    %v569 = vpop.f32.mrf.mxu0
    %570 = vdwg.mxu0
    %v571 = vld [vmem:[%s8] sm:$0xf]
    %572 = vrot.lane.b32.xlu0 %v568, 9
    %v573 = vpop.permute.xlu0 %572
    %v574 = vld [vmem:[%s14] sm:$0x1]
    %v575 = vperm.slane %v574, 0
    %v576 = vmul.f32 %v573, %v575
    %v577 = vpack.c.bf16 %v576, %v576
    %578 = vrot.lane.b32.xlu0 %v568, 8
    %v579 = vpop.permute.xlu0 %578
    %v580 = vld [vmem:[%s14 + $0x1] sm:$0x1]
    %v581 = vperm.slane %v580, 0
    %v582 = vmul.f32 %v579, %v581
    %v583 = vpack.c.bf16 %v582, %v582
    %584 = vrot.lane.b32.xlu0 %v568, 7
    %v585 = vpop.permute.xlu0 %584
    %v586 = vld [vmem:[%s14 + $0x2] sm:$0x1]
    %v587 = vperm.slane %v586, 0
    %v588 = vmul.f32 %v585, %v587
    %v589 = vpack.c.bf16 %v588, %v588
    %590 = vrot.lane.b32.xlu0 %v568, 1
    %v591 = vpop.permute.xlu0 %590
    %v592 = vld [vmem:[%s14 + $0x3] sm:$0x1]
    %v593 = vperm.slane %v592, 0
    %v594 = vmul.f32 %v591, %v593
    %v595 = vpack.c.bf16 %v594, %v594
    %v596 = vpack.c.bf16 %v568, %v568
    %597 = vrot.lane.b32.xlu0 %v568, 127
    %v598 = vpop.permute.xlu0 %597
    %v599 = vld [vmem:[%s14 + $0x5] sm:$0x1]
    %v600 = vperm.slane %v599, 0
    %v601 = vmul.f32 %v598, %v600
    %v602 = vpack.c.bf16 %v601, %v601
    %603 = vrot.lane.b32.xlu0 %v568, 121
    %v604 = vpop.permute.xlu0 %603
    %v605 = vld [vmem:[%s14 + $0x6] sm:$0x1]
    %v606 = vperm.slane %v605, 0
    %v607 = vmul.f32 %v604, %v606
    %v608 = vpack.c.bf16 %v607, %v607
    %609 = vrot.lane.b32.xlu0 %v568, 120
    %v610 = vpop.permute.xlu0 %609
    %v611 = vld [vmem:[%s14 + $0x7] sm:$0x1]
    %v612 = vperm.slane %v611, 0
    %v613 = vmul.f32 %v610, %v612
    %v614 = vpack.c.bf16 %v613, %v613
    %615 = vrot.lane.b32.xlu0 %v568, 119
    %v616 = vpop.permute.xlu0 %615
    %v617 = vld [vmem:[%s14 + $0x8] sm:$0x1]
    %v618 = vperm.slane %v617, 0
    %v619 = vmul.f32 %v616, %v618
    %v620 = vpack.c.bf16 %v619, %v619
    %v622 = vunpack.c.l.b16 %v583
    %v623 = vpack.c.b16 %v622, %v622
    %v625 = vunpack.c.l.b16 %v595
    %v626 = vpack.c.b16 %v625, %v625
    %v628 = vunpack.c.l.b16 %v602
    %v629 = vpack.c.b16 %v628, %v628
    %v631 = vunpack.c.l.b16 %v614
    %v632 = vpack.c.b16 %v631, %v631
    %vm633 = vcmask 1043456
    %v636 = vsel %vm633, %v577, %v623
    %v640 = vsel %vm633, %v589, %v626
    %v644 = vsel %vm633, %v596, %v629
    %v648 = vsel %vm633, %v608, %v632
    %v650 = vld [vmem:[%s9] sm:$0xff]
    %652 = vset.pattern.permute.xlu0 0
    %653 = vperm.xlu0 %652, %v650
    %v654 = vpop.permute.xlu0 %653
    %vm656 = vcmask 588800
    %v658 = vsel %vm656, %v571, 0
    %v661 = vsel %vm633, %v620, 0
    %663 = vmatpush.bf16.msra.mxu0 0
    %664 = vmatpush.bf16.msra.mxu0 0
    %665 = vmatpush.bf16.msra.mxu0 0
    %666 = vmatpush.bf16.msra.mxu0 %v661
    %667 = vmatpush.bf16.msra.mxu0 %v648
    %668 = vmatpush.bf16.msra.mxu0 %v644
    %669 = vmatpush.bf16.msra.mxu0 %v640
    %670 = vmatpush.bf16.msra.mxu0 %v636
    %671 = vmatmul.bf16.gmra.mxu0 %v658
    %v672 = vpop.f32.mrf.mxu0
    %v673 = vadd.f32 %v654, %v672
    %v674 = vpop.f32.mrf.mxu0
    %675 = vdwg.mxu0
    %v676 = vmax.f32 %v673, 0.0
    %v677 = vld [vmem:[%s10] sm:$0xf]
    %v678 = vld [vmem:[%s10 + $0x4] sm:$0xf]
    %v679 = vpack.c.bf16 %v676, %v676
    %v680 = vld [vmem:[%s11] sm:$0xff]
    %v681 = vld [vmem:[%s11 + $0x8] sm:$0xff]
    %683 = vset.pattern.permute.xlu0 0
    %684 = vperm.xlu0 %683, %v680
    %v685 = vpop.permute.xlu0 %684
    %688 = vset.pattern.permute.xlu0 0
    %689 = vperm.xlu0 %688, %v681
    %v690 = vpop.permute.xlu0 %689
    %v694 = vunpack.c.l.b16 %v677
    %v695 = vunpack.c.l.b16 %v678
    %v696 = vpack.c.b16 %v695, %v694
    %vm697 = vcmask 64512
    %v699 = vsel %vm697, %v696, 0
    %v702 = vsel %vm633, %v679, 0
    %704 = vmatpush.bf16.msra.mxu0 0
    %705 = vmatpush.bf16.msra.mxu0 0
    %706 = vmatpush.bf16.msra.mxu0 0
    %707 = vmatpush.bf16.msra.mxu0 0
    %708 = vmatpush.bf16.msra.mxu0 0
    %709 = vmatpush.bf16.msra.mxu0 0
    %710 = vmatpush.bf16.msra.mxu0 0
    %711 = vmatpush.bf16.msra.mxu0 %v702
    %712 = vmatmul.bf16.gmra.mxu0 %v699
    %v713 = vpop.f32.mrf.mxu0
    %v714 = vadd.f32 %v685, %v713
    %v715 = vpop.f32.mrf.mxu0
    %v716 = vadd.f32 %v690, %v715
    %717 = vdwg.mxu0
    %v718 = vpack.c.bf16 %v716, %v714
    %v719 = vld [vmem:[#allocation7] sm:$0xff]
    %v720 = vld [vmem:[#allocation7 + $0x8] sm:$0xff]
    %v721 = vld [vmem:[#allocation7 + $0x10] sm:$0xff]
    %v722 = vld [vmem:[#allocation7 + $0x18] sm:$0xff]
    %v723 = vld [vmem:[#allocation7 + $0x20] sm:$0xff]
    %v724 = vld [vmem:[#allocation7 + $0x28] sm:$0xff]
    %v725 = vld [vmem:[#allocation7 + $0x30] sm:$0xff]
    %v726 = vld [vmem:[#allocation7 + $0x38] sm:$0xff]
    %v727 = vld [vmem:[#allocation7 + $0x40] sm:$0xff]
    %v728 = vld [vmem:[#allocation7 + $0x48] sm:$0xff]
    %v729 = vld [vmem:[#allocation7 + $0x50] sm:$0xff]
    %v730 = vld [vmem:[#allocation7 + $0x58] sm:$0xff]
    %v731 = vld [vmem:[#allocation7 + $0x60] sm:$0xff]
    %v732 = vld [vmem:[#allocation7 + $0x68] sm:$0xff]
    %v733 = vld [vmem:[#allocation7 + $0x70] sm:$0xff]
    %v734 = vld [vmem:[#allocation7 + $0x78] sm:$0xff]
    %v735 = vld [vmem:[#allocation7 + $0x80] sm:$0xff]
    %v736 = vld [vmem:[#allocation7 + $0x88] sm:$0xff]
    %v737 = vld [vmem:[#allocation7 + $0x90] sm:$0xff]
    %v738 = vld [vmem:[#allocation7 + $0x98] sm:$0xff]
    %v739 = vld [vmem:[#allocation7 + $0xa0] sm:$0xff]
    %v740 = vld [vmem:[#allocation7 + $0xa8] sm:$0xff]
    %v741 = vld [vmem:[#allocation7 + $0xb0] sm:$0xff]
    %v742 = vld [vmem:[#allocation7 + $0xb8] sm:$0xff]
    %v743 = vld [vmem:[#allocation7 + $0xc0] sm:$0xff]
    %v744 = vld [vmem:[#allocation7 + $0xc8] sm:$0xff]
    %v745 = vld [vmem:[#allocation7 + $0xd0] sm:$0xff]
    %v746 = vld [vmem:[#allocation7 + $0xd8] sm:$0xff]
    %v747 = vld [vmem:[#allocation7 + $0xe0] sm:$0xff]
    %v748 = vld [vmem:[#allocation7 + $0xe8] sm:$0xff]
    %v749 = vld [vmem:[#allocation7 + $0xf0] sm:$0xff]
    %v750 = vld [vmem:[#allocation7 + $0xf8] sm:$0xff]
    %v783 = vunpack.c.l.b16 %v719
    %v784 = vunpack.c.h.b16 %v719
    %v785 = vunpack.c.l.b16 %v720
    %v786 = vunpack.c.h.b16 %v720
    %v787 = vunpack.c.l.b16 %v721
    %v788 = vunpack.c.h.b16 %v721
    %v789 = vunpack.c.l.b16 %v722
    %v790 = vunpack.c.h.b16 %v722
    %v791 = vunpack.c.l.b16 %v723
    %v792 = vunpack.c.h.b16 %v723
    %v793 = vunpack.c.l.b16 %v724
    %v794 = vunpack.c.h.b16 %v724
    %v795 = vunpack.c.l.b16 %v725
    %v796 = vunpack.c.h.b16 %v725
    %v797 = vunpack.c.l.b16 %v726
    %v798 = vunpack.c.h.b16 %v726
    %v799 = vunpack.c.l.b16 %v727
    %v800 = vunpack.c.h.b16 %v727
    %v801 = vunpack.c.l.b16 %v728
    %v802 = vunpack.c.h.b16 %v728
    %v803 = vunpack.c.l.b16 %v729
    %v804 = vunpack.c.h.b16 %v729
    %v805 = vunpack.c.l.b16 %v730
    %v806 = vunpack.c.h.b16 %v730
    %v807 = vunpack.c.l.b16 %v731
    %v808 = vunpack.c.h.b16 %v731
    %v809 = vunpack.c.l.b16 %v732
    %v810 = vunpack.c.h.b16 %v732
    %v811 = vunpack.c.l.b16 %v733
    %v812 = vunpack.c.h.b16 %v733
    %v813 = vunpack.c.l.b16 %v734
    %v814 = vunpack.c.h.b16 %v734
    %v815 = vunpack.c.l.b16 %v735
    %v816 = vunpack.c.h.b16 %v735
    %v817 = vunpack.c.l.b16 %v736
    %v818 = vunpack.c.h.b16 %v736
    %v819 = vunpack.c.l.b16 %v737
    %v820 = vunpack.c.h.b16 %v737
    %v821 = vunpack.c.l.b16 %v738
    %v822 = vunpack.c.h.b16 %v738
    %v823 = vunpack.c.l.b16 %v739
    %v824 = vunpack.c.h.b16 %v739
    %v825 = vunpack.c.l.b16 %v740
    %v826 = vunpack.c.h.b16 %v740
    %v827 = vunpack.c.l.b16 %v741
    %v828 = vunpack.c.h.b16 %v741
    %v829 = vunpack.c.l.b16 %v742
    %v830 = vunpack.c.h.b16 %v742
    %v831 = vunpack.c.l.b16 %v743
    %v832 = vunpack.c.h.b16 %v743
    %v833 = vunpack.c.l.b16 %v744
    %v834 = vunpack.c.h.b16 %v744
    %v835 = vunpack.c.l.b16 %v745
    %v836 = vunpack.c.h.b16 %v745
    %v837 = vunpack.c.l.b16 %v746
    %v838 = vunpack.c.h.b16 %v746
    %v839 = vunpack.c.l.b16 %v747
    %v840 = vunpack.c.h.b16 %v747
    %v841 = vunpack.c.l.b16 %v748
    %v842 = vunpack.c.h.b16 %v748
    %v843 = vunpack.c.l.b16 %v749
    %v844 = vunpack.c.h.b16 %v749
    %v845 = vunpack.c.l.b16 %v750
    %v846 = vunpack.c.h.b16 %v750
    %v847 = vpack.c.b16 %v787, %v783
    %v848 = vpack.c.b16 %v788, %v784
    %v849 = vpack.c.b16 %v789, %v785
    %v850 = vpack.c.b16 %v790, %v786
    %v851 = vpack.c.b16 %v795, %v791
    %v852 = vpack.c.b16 %v796, %v792
    %v853 = vpack.c.b16 %v797, %v793
    %v854 = vpack.c.b16 %v798, %v794
    %v855 = vpack.c.b16 %v803, %v799
    %v856 = vpack.c.b16 %v804, %v800
    %v857 = vpack.c.b16 %v805, %v801
    %v858 = vpack.c.b16 %v806, %v802
    %v859 = vpack.c.b16 %v811, %v807
    %v860 = vpack.c.b16 %v812, %v808
    %v861 = vpack.c.b16 %v813, %v809
    %v862 = vpack.c.b16 %v814, %v810
    %v863 = vpack.c.b16 %v819, %v815
    %v864 = vpack.c.b16 %v820, %v816
    %v865 = vpack.c.b16 %v821, %v817
    %v866 = vpack.c.b16 %v822, %v818
    %v867 = vpack.c.b16 %v827, %v823
    %v868 = vpack.c.b16 %v828, %v824
    %v869 = vpack.c.b16 %v829, %v825
    %v870 = vpack.c.b16 %v830, %v826
    %v871 = vpack.c.b16 %v835, %v831
    %v872 = vpack.c.b16 %v836, %v832
    %v873 = vpack.c.b16 %v837, %v833
    %v874 = vpack.c.b16 %v838, %v834
    %v875 = vpack.c.b16 %v843, %v839
    %v876 = vpack.c.b16 %v844, %v840
    %v877 = vpack.c.b16 %v845, %v841
    %v878 = vpack.c.b16 %v846, %v842
    %911 = vmatpush.bf16.msra.mxu0 %v875
    %912 = vmatpush.bf16.msra.mxu0 %v871
    %913 = vmatpush.bf16.msra.mxu0 %v867
    %914 = vmatpush.bf16.msra.mxu0 %v863
    %915 = vmatpush.bf16.msra.mxu0 %v859
    %916 = vmatpush.bf16.msra.mxu0 %v855
    %917 = vmatpush.bf16.msra.mxu0 %v851
    %918 = vmatpush.bf16.msra.mxu0 %v847
    %919 = vmatmul.bf16.gmra.mxu0 %v718
    %v920 = vpop.f32.mrf.mxu0
    %v921 = vadd.f32 0.0, %v920
    %v922 = vpop.f32.mrf.mxu0
    %v923 = vadd.f32 0.0, %v922
    %924 = vdwg.mxu0
    %925 = vmatpush.bf16.msra.mxu0 %v876
    %926 = vmatpush.bf16.msra.mxu0 %v872
    %927 = vmatpush.bf16.msra.mxu0 %v868
    %928 = vmatpush.bf16.msra.mxu0 %v864
    %929 = vmatpush.bf16.msra.mxu0 %v860
    %930 = vmatpush.bf16.msra.mxu0 %v856
    %931 = vmatpush.bf16.msra.mxu0 %v852
    %932 = vmatpush.bf16.msra.mxu0 %v848
    %933 = vmatmul.bf16.gmra.mxu0 %v718
    %v934 = vpop.f32.mrf.mxu0
    %v935 = vadd.f32 0.0, %v934
    %v936 = vpop.f32.mrf.mxu0
    %v937 = vadd.f32 0.0, %v936
    %938 = vdwg.mxu0
    %939 = vmatpush.bf16.msra.mxu0 %v877
    %940 = vmatpush.bf16.msra.mxu0 %v873
    %941 = vmatpush.bf16.msra.mxu0 %v869
    %942 = vmatpush.bf16.msra.mxu0 %v865
    %943 = vmatpush.bf16.msra.mxu0 %v861
    %944 = vmatpush.bf16.msra.mxu0 %v857
    %945 = vmatpush.bf16.msra.mxu0 %v853
    %946 = vmatpush.bf16.msra.mxu0 %v849
    %947 = vmatmul.bf16.gmra.mxu0 %v718
    %v948 = vpop.f32.mrf.mxu0
    %v949 = vadd.f32 0.0, %v948
    %v950 = vpop.f32.mrf.mxu0
    %v951 = vadd.f32 0.0, %v950
    %952 = vdwg.mxu0
    %953 = vmatpush.bf16.msra.mxu0 %v878
    %954 = vmatpush.bf16.msra.mxu0 %v874
    %955 = vmatpush.bf16.msra.mxu0 %v870
    %956 = vmatpush.bf16.msra.mxu0 %v866
    %957 = vmatpush.bf16.msra.mxu0 %v862
    %958 = vmatpush.bf16.msra.mxu0 %v858
    %959 = vmatpush.bf16.msra.mxu0 %v854
    %960 = vmatpush.bf16.msra.mxu0 %v850
    %961 = vmatmul.bf16.gmra.mxu0 %v718
    %v962 = vpop.f32.mrf.mxu0
    %v963 = vadd.f32 0.0, %v962
    %v964 = vpop.f32.mrf.mxu0
    %v965 = vadd.f32 0.0, %v964
    %966 = vdwg.mxu0
    %v967 = vsub.f32 0.0, %v921
    %v968 = vsub.f32 0.0, %v935
    %v969 = vsub.f32 0.0, %v949
    %v970 = vsub.f32 0.0, %v963
    %v971 = vsub.f32 0.0, %v923
    %v972 = vsub.f32 0.0, %v937
    %v973 = vsub.f32 0.0, %v951
    %v974 = vsub.f32 0.0, %v965
    %v975 = vmul.f32 %v967, 1.442695
    %v976 = vpow.pop %v975
    %v977 = vmul.f32 %v968, 1.442695
    %v978 = vpow.pop %v977
    %v979 = vmul.f32 %v969, 1.442695
    %v980 = vpow.pop %v979
    %v981 = vmul.f32 %v970, 1.442695
    %v982 = vpow.pop %v981
    %v983 = vmul.f32 %v971, 1.442695
    %v984 = vpow.pop %v983
    %v985 = vmul.f32 %v972, 1.442695
    %v986 = vpow.pop %v985
    %v987 = vmul.f32 %v973, 1.442695
    %v988 = vpow.pop %v987
    %v989 = vmul.f32 %v974, 1.442695
    %v990 = vpow.pop %v989
    %v991 = vadd.f32 %v976, 1.0
    %v992 = vadd.f32 %v978, 1.0
    %v993 = vadd.f32 %v980, 1.0
    %v994 = vadd.f32 %v982, 1.0
    %v995 = vadd.f32 %v984, 1.0
    %v996 = vadd.f32 %v986, 1.0
    %v997 = vadd.f32 %v988, 1.0
    %v998 = vadd.f32 %v990, 1.0
    %v999 = vrcp.pop %v991
    %v1000 = vmul.f32 %v991, %v999
    %v1001 = vsub.f32 1.0, %v1000
    %v1002 = vmul.f32 %v999, %v1001
    %v1003 = vadd.f32 %v999, %v1002
    %vm1004 = vweird.f32 %v991
    %vm1005 = vweird.f32 %v999
    %vm1006 = vmor %vm1004, %vm1005
    %v1007 = vsel %vm1006, %v999, %v1003
    %v1008 = vand.u32 2147483647, %v991
    %vm1009 = vcmp.eq.f32.partialorder %v1008, 8.507059e+37
    %v1010 = vand.u32 %v991, 2147483648
    %v1011 = vor.u32 1.1754944e-38, %v1010
    %v1012 = vsel %vm1009, %v1011, %v1007
    %v1013 = vrcp.pop %v992
    %v1014 = vmul.f32 %v992, %v1013
    %v1015 = vsub.f32 1.0, %v1014
    %v1016 = vmul.f32 %v1013, %v1015
    %v1017 = vadd.f32 %v1013, %v1016
    %vm1018 = vweird.f32 %v992
    %vm1019 = vweird.f32 %v1013
    %vm1020 = vmor %vm1018, %vm1019
    %v1021 = vsel %vm1020, %v1013, %v1017
    %v1022 = vand.u32 2147483647, %v992
    %vm1023 = vcmp.eq.f32.partialorder %v1022, 8.507059e+37
    %v1024 = vand.u32 %v992, 2147483648
    %v1025 = vor.u32 1.1754944e-38, %v1024
    %v1026 = vsel %vm1023, %v1025, %v1021
    %v1027 = vrcp.pop %v993
    %v1028 = vmul.f32 %v993, %v1027
    %v1029 = vsub.f32 1.0, %v1028
    %v1030 = vmul.f32 %v1027, %v1029
    %v1031 = vadd.f32 %v1027, %v1030
    %vm1032 = vweird.f32 %v993
    %vm1033 = vweird.f32 %v1027
    %vm1034 = vmor %vm1032, %vm1033
    %v1035 = vsel %vm1034, %v1027, %v1031
    %v1036 = vand.u32 2147483647, %v993
    %vm1037 = vcmp.eq.f32.partialorder %v1036, 8.507059e+37
    %v1038 = vand.u32 %v993, 2147483648
    %v1039 = vor.u32 1.1754944e-38, %v1038
    %v1040 = vsel %vm1037, %v1039, %v1035
    %v1041 = vrcp.pop %v994
    %v1042 = vmul.f32 %v994, %v1041
    %v1043 = vsub.f32 1.0, %v1042
    %v1044 = vmul.f32 %v1041, %v1043
    %v1045 = vadd.f32 %v1041, %v1044
    %vm1046 = vweird.f32 %v994
    %vm1047 = vweird.f32 %v1041
    %vm1048 = vmor %vm1046, %vm1047
    %v1049 = vsel %vm1048, %v1041, %v1045
    %v1050 = vand.u32 2147483647, %v994
    %vm1051 = vcmp.eq.f32.partialorder %v1050, 8.507059e+37
    %v1052 = vand.u32 %v994, 2147483648
    %v1053 = vor.u32 1.1754944e-38, %v1052
    %v1054 = vsel %vm1051, %v1053, %v1049
    %v1055 = vrcp.pop %v995
    %v1056 = vmul.f32 %v995, %v1055
    %v1057 = vsub.f32 1.0, %v1056
    %v1058 = vmul.f32 %v1055, %v1057
    %v1059 = vadd.f32 %v1055, %v1058
    %vm1060 = vweird.f32 %v995
    %vm1061 = vweird.f32 %v1055
    %vm1062 = vmor %vm1060, %vm1061
    %v1063 = vsel %vm1062, %v1055, %v1059
    %v1064 = vand.u32 2147483647, %v995
    %vm1065 = vcmp.eq.f32.partialorder %v1064, 8.507059e+37
    %v1066 = vand.u32 %v995, 2147483648
    %v1067 = vor.u32 1.1754944e-38, %v1066
    %v1068 = vsel %vm1065, %v1067, %v1063
    %v1069 = vrcp.pop %v996
    %v1070 = vmul.f32 %v996, %v1069
    %v1071 = vsub.f32 1.0, %v1070
    %v1072 = vmul.f32 %v1069, %v1071
    %v1073 = vadd.f32 %v1069, %v1072
    %vm1074 = vweird.f32 %v996
    %vm1075 = vweird.f32 %v1069
    %vm1076 = vmor %vm1074, %vm1075
    %v1077 = vsel %vm1076, %v1069, %v1073
    %v1078 = vand.u32 2147483647, %v996
    %vm1079 = vcmp.eq.f32.partialorder %v1078, 8.507059e+37
    %v1080 = vand.u32 %v996, 2147483648
    %v1081 = vor.u32 1.1754944e-38, %v1080
    %v1082 = vsel %vm1079, %v1081, %v1077
    %v1083 = vrcp.pop %v997
    %v1084 = vmul.f32 %v997, %v1083
    %v1085 = vsub.f32 1.0, %v1084
    %v1086 = vmul.f32 %v1083, %v1085
    %v1087 = vadd.f32 %v1083, %v1086
    %vm1088 = vweird.f32 %v997
    %vm1089 = vweird.f32 %v1083
    %vm1090 = vmor %vm1088, %vm1089
    %v1091 = vsel %vm1090, %v1083, %v1087
    %v1092 = vand.u32 2147483647, %v997
    %vm1093 = vcmp.eq.f32.partialorder %v1092, 8.507059e+37
    %v1094 = vand.u32 %v997, 2147483648
    %v1095 = vor.u32 1.1754944e-38, %v1094
    %v1096 = vsel %vm1093, %v1095, %v1091
    %v1097 = vrcp.pop %v998
    %v1098 = vmul.f32 %v998, %v1097
    %v1099 = vsub.f32 1.0, %v1098
    %v1100 = vmul.f32 %v1097, %v1099
    %v1101 = vadd.f32 %v1097, %v1100
    %vm1102 = vweird.f32 %v998
    %vm1103 = vweird.f32 %v1097
    %vm1104 = vmor %vm1102, %vm1103
    %v1105 = vsel %vm1104, %v1097, %v1101
    %v1106 = vand.u32 2147483647, %v998
    %vm1107 = vcmp.eq.f32.partialorder %v1106, 8.507059e+37
    %v1108 = vand.u32 %v998, 2147483648
    %v1109 = vor.u32 1.1754944e-38, %v1108
    %v1110 = vsel %vm1107, %v1109, %v1105
    %v1111 = vld [vmem:[%s3] sm:$0xff]
    %v1112 = vld [vmem:[%s3 + $0x8] sm:$0xff]
    %1113 = vrot.lane.b32.xlu0 %v247, 17
    %v1114 = vpop.permute.xlu0 %1113
    %1115 = vrot.lane.b32.xlu0 %v251, 17
    %v1116 = vpop.permute.xlu0 %1115
    %1117 = vrot.lane.b32.xlu0 %v248, 17
    %v1118 = vpop.permute.xlu0 %1117
    %1119 = vrot.lane.b32.xlu0 %v252, 17
    %v1120 = vpop.permute.xlu0 %1119
    %1121 = vrot.lane.b32.xlu0 %v249, 17
    %v1122 = vpop.permute.xlu0 %1121
    %1123 = vrot.lane.b32.xlu0 %v253, 17
    %v1124 = vpop.permute.xlu0 %1123
    %1125 = vrot.lane.b32.xlu0 %v250, 17
    %v1126 = vpop.permute.xlu0 %1125
    %1127 = vrot.lane.b32.xlu0 %v254, 17
    %v1128 = vpop.permute.xlu0 %1127
    %v1129 = vlaneseq
    %v1130 = vand.u32 %v1129, 127
    %vm1131 = vcmp.lt.s32.totalorder %v1130, 17
    %v1132 = vsel %vm1131, %v1122, %v1126
    %v1133 = vsel %vm1131, %v1124, %v1128
    %v1134 = vsel %vm1131, %v1118, %v1122
    %v1135 = vsel %vm1131, %v1120, %v1124
    %v1136 = vsel %vm1131, %v1114, %v1118
    %v1137 = vsel %vm1131, %v1116, %v1120
    %v1138 = vsel %vm1131, %v1126, %v1114
    %v1139 = vsel %vm1131, %v1128, %v1116
    %v1140 = vld [vmem:[#allocation8] ss:$8 sm:$0xf]
    %v1142 = vperm.slane %v1140, 0
    %v1143 = vperm.slane %v1140, 1
    %v1144 = vperm.slane %v1140, 2
    %v1145 = vperm.slane %v1140, 3
    %v1150 = vmul.f32 %v1138, %v1142
    %v1151 = vmul.f32 %v1136, %v1143
    %v1152 = vmul.f32 %v1134, %v1144
    %v1153 = vmul.f32 %v1132, %v1145
    %v1154 = vmul.f32 %v1139, %v1142
    %v1155 = vmul.f32 %v1137, %v1143
    %v1156 = vmul.f32 %v1135, %v1144
    %v1157 = vmul.f32 %v1133, %v1145
    %v1158 = vpack.c.bf16 %v1151, %v1150
    %v1159 = vpack.c.bf16 %v1153, %v1152
    %v1160 = vpack.c.bf16 %v1155, %v1154
    %v1161 = vpack.c.bf16 %v1157, %v1156
    %1162 = vrot.lane.b32.xlu0 %v247, 16
    %v1163 = vpop.permute.xlu0 %1162
    %1164 = vrot.lane.b32.xlu0 %v251, 16
    %v1165 = vpop.permute.xlu0 %1164
    %1166 = vrot.lane.b32.xlu0 %v248, 16
    %v1167 = vpop.permute.xlu0 %1166
    %1168 = vrot.lane.b32.xlu0 %v252, 16
    %v1169 = vpop.permute.xlu0 %1168
    %1170 = vrot.lane.b32.xlu0 %v249, 16
    %v1171 = vpop.permute.xlu0 %1170
    %1172 = vrot.lane.b32.xlu0 %v253, 16
    %v1173 = vpop.permute.xlu0 %1172
    %1174 = vrot.lane.b32.xlu0 %v250, 16
    %v1175 = vpop.permute.xlu0 %1174
    %1176 = vrot.lane.b32.xlu0 %v254, 16
    %v1177 = vpop.permute.xlu0 %1176
    %vm1178 = vcmp.lt.s32.totalorder %v1130, 16
    %v1179 = vsel %vm1178, %v1171, %v1175
    %v1180 = vsel %vm1178, %v1173, %v1177
    %v1181 = vsel %vm1178, %v1167, %v1171
    %v1182 = vsel %vm1178, %v1169, %v1173
    %v1183 = vsel %vm1178, %v1163, %v1167
    %v1184 = vsel %vm1178, %v1165, %v1169
    %v1185 = vsel %vm1178, %v1175, %v1163
    %v1186 = vsel %vm1178, %v1177, %v1165
    %s1187 = scalar_lea.vmem [#allocation8], 1
    %v1188 = vld [vmem:[%s1187] ss:$8 sm:$0xf]
    %v1190 = vperm.slane %v1188, 0
    %v1191 = vperm.slane %v1188, 1
    %v1192 = vperm.slane %v1188, 2
    %v1193 = vperm.slane %v1188, 3
    %v1198 = vmul.f32 %v1185, %v1190
    %v1199 = vmul.f32 %v1183, %v1191
    %v1200 = vmul.f32 %v1181, %v1192
    %v1201 = vmul.f32 %v1179, %v1193
    %v1202 = vmul.f32 %v1186, %v1190
    %v1203 = vmul.f32 %v1184, %v1191
    %v1204 = vmul.f32 %v1182, %v1192
    %v1205 = vmul.f32 %v1180, %v1193
    %v1206 = vpack.c.bf16 %v1199, %v1198
    %v1207 = vpack.c.bf16 %v1201, %v1200
    %v1208 = vpack.c.bf16 %v1203, %v1202
    %v1209 = vpack.c.bf16 %v1205, %v1204
    %1210 = vrot.lane.b32.xlu0 %v247, 15
    %v1211 = vpop.permute.xlu0 %1210
    %1212 = vrot.lane.b32.xlu0 %v251, 15
    %v1213 = vpop.permute.xlu0 %1212
    %1214 = vrot.lane.b32.xlu0 %v248, 15
    %v1215 = vpop.permute.xlu0 %1214
    %1216 = vrot.lane.b32.xlu0 %v252, 15
    %v1217 = vpop.permute.xlu0 %1216
    %1218 = vrot.lane.b32.xlu0 %v249, 15
    %v1219 = vpop.permute.xlu0 %1218
    %1220 = vrot.lane.b32.xlu0 %v253, 15
    %v1221 = vpop.permute.xlu0 %1220
    %1222 = vrot.lane.b32.xlu0 %v250, 15
    %v1223 = vpop.permute.xlu0 %1222
    %1224 = vrot.lane.b32.xlu0 %v254, 15
    %v1225 = vpop.permute.xlu0 %1224
    %vm1226 = vcmp.lt.s32.totalorder %v1130, 15
    %v1227 = vsel %vm1226, %v1219, %v1223
    %v1228 = vsel %vm1226, %v1221, %v1225
    %v1229 = vsel %vm1226, %v1215, %v1219
    %v1230 = vsel %vm1226, %v1217, %v1221
    %v1231 = vsel %vm1226, %v1211, %v1215
    %v1232 = vsel %vm1226, %v1213, %v1217
    %v1233 = vsel %vm1226, %v1223, %v1211
    %v1234 = vsel %vm1226, %v1225, %v1213
    %s1235 = scalar_lea.vmem [#allocation8], 2
    %v1236 = vld [vmem:[%s1235] ss:$8 sm:$0xf]
    %v1238 = vperm.slane %v1236, 0
    %v1239 = vperm.slane %v1236, 1
    %v1240 = vperm.slane %v1236, 2
    %v1241 = vperm.slane %v1236, 3
    %v1246 = vmul.f32 %v1233, %v1238
    %v1247 = vmul.f32 %v1231, %v1239
    %v1248 = vmul.f32 %v1229, %v1240
    %v1249 = vmul.f32 %v1227, %v1241
    %v1250 = vmul.f32 %v1234, %v1238
    %v1251 = vmul.f32 %v1232, %v1239
    %v1252 = vmul.f32 %v1230, %v1240
    %v1253 = vmul.f32 %v1228, %v1241
    %v1254 = vpack.c.bf16 %v1247, %v1246
    %v1255 = vpack.c.bf16 %v1249, %v1248
    %v1256 = vpack.c.bf16 %v1251, %v1250
    %v1257 = vpack.c.bf16 %v1253, %v1252
    %1258 = vrot.lane.b32.xlu0 %v247, 1
    %v1259 = vpop.permute.xlu0 %1258
    %1260 = vrot.lane.b32.xlu0 %v251, 1
    %v1261 = vpop.permute.xlu0 %1260
    %1262 = vrot.lane.b32.xlu0 %v248, 1
    %v1263 = vpop.permute.xlu0 %1262
    %1264 = vrot.lane.b32.xlu0 %v252, 1
    %v1265 = vpop.permute.xlu0 %1264
    %1266 = vrot.lane.b32.xlu0 %v249, 1
    %v1267 = vpop.permute.xlu0 %1266
    %1268 = vrot.lane.b32.xlu0 %v253, 1
    %v1269 = vpop.permute.xlu0 %1268
    %1270 = vrot.lane.b32.xlu0 %v250, 1
    %v1271 = vpop.permute.xlu0 %1270
    %1272 = vrot.lane.b32.xlu0 %v254, 1
    %v1273 = vpop.permute.xlu0 %1272
    %vm1274 = vcmp.lt.s32.totalorder %v1130, 1
    %v1275 = vsel %vm1274, %v1267, %v1271
    %v1276 = vsel %vm1274, %v1269, %v1273
    %v1277 = vsel %vm1274, %v1263, %v1267
    %v1278 = vsel %vm1274, %v1265, %v1269
    %v1279 = vsel %vm1274, %v1259, %v1263
    %v1280 = vsel %vm1274, %v1261, %v1265
    %v1281 = vsel %vm1274, %v1271, %v1259
    %v1282 = vsel %vm1274, %v1273, %v1261
    %s1283 = scalar_lea.vmem [#allocation8], 3
    %v1284 = vld [vmem:[%s1283] ss:$8 sm:$0xf]
    %v1286 = vperm.slane %v1284, 0
    %v1287 = vperm.slane %v1284, 1
    %v1288 = vperm.slane %v1284, 2
    %v1289 = vperm.slane %v1284, 3
    %v1294 = vmul.f32 %v1281, %v1286
    %v1295 = vmul.f32 %v1279, %v1287
    %v1296 = vmul.f32 %v1277, %v1288
    %v1297 = vmul.f32 %v1275, %v1289
    %v1298 = vmul.f32 %v1282, %v1286
    %v1299 = vmul.f32 %v1280, %v1287
    %v1300 = vmul.f32 %v1278, %v1288
    %v1301 = vmul.f32 %v1276, %v1289
    %v1302 = vpack.c.bf16 %v1295, %v1294
    %v1303 = vpack.c.bf16 %v1297, %v1296
    %v1304 = vpack.c.bf16 %v1299, %v1298
    %v1305 = vpack.c.bf16 %v1301, %v1300
    %v1306 = vpack.c.bf16 %v248, %v247
    %v1307 = vpack.c.bf16 %v250, %v249
    %v1308 = vpack.c.bf16 %v252, %v251
    %v1309 = vpack.c.bf16 %v254, %v253
    %1310 = vrot.lane.b32.xlu0 %v247, 127
    %v1311 = vpop.permute.xlu0 %1310
    %1312 = vrot.lane.b32.xlu0 %v251, 127
    %v1313 = vpop.permute.xlu0 %1312
    %1314 = vrot.lane.b32.xlu0 %v248, 127
    %v1315 = vpop.permute.xlu0 %1314
    %1316 = vrot.lane.b32.xlu0 %v252, 127
    %v1317 = vpop.permute.xlu0 %1316
    %1318 = vrot.lane.b32.xlu0 %v249, 127
    %v1319 = vpop.permute.xlu0 %1318
    %1320 = vrot.lane.b32.xlu0 %v253, 127
    %v1321 = vpop.permute.xlu0 %1320
    %1322 = vrot.lane.b32.xlu0 %v250, 127
    %v1323 = vpop.permute.xlu0 %1322
    %1324 = vrot.lane.b32.xlu0 %v254, 127
    %v1325 = vpop.permute.xlu0 %1324
    %vm1326 = vcmp.lt.s32.totalorder %v1130, 127
    %v1327 = vsel %vm1326, %v1319, %v1323
    %v1328 = vsel %vm1326, %v1321, %v1325
    %v1329 = vsel %vm1326, %v1315, %v1319
    %v1330 = vsel %vm1326, %v1317, %v1321
    %v1331 = vsel %vm1326, %v1311, %v1315
    %v1332 = vsel %vm1326, %v1313, %v1317
    %v1333 = vsel %vm1326, %v1323, %v1311
    %v1334 = vsel %vm1326, %v1325, %v1313
    %s1335 = scalar_lea.vmem [#allocation8], 5
    %v1336 = vld [vmem:[%s1335] ss:$8 sm:$0xf]
    %v1338 = vperm.slane %v1336, 0
    %v1339 = vperm.slane %v1336, 1
    %v1340 = vperm.slane %v1336, 2
    %v1341 = vperm.slane %v1336, 3
    %v1346 = vmul.f32 %v1331, %v1338
    %v1347 = vmul.f32 %v1329, %v1339
    %v1348 = vmul.f32 %v1327, %v1340
    %v1349 = vmul.f32 %v1333, %v1341
    %v1350 = vmul.f32 %v1332, %v1338
    %v1351 = vmul.f32 %v1330, %v1339
    %v1352 = vmul.f32 %v1328, %v1340
    %v1353 = vmul.f32 %v1334, %v1341
    %v1354 = vpack.c.bf16 %v1347, %v1346
    %v1355 = vpack.c.bf16 %v1349, %v1348
    %v1356 = vpack.c.bf16 %v1351, %v1350
    %v1357 = vpack.c.bf16 %v1353, %v1352
    %1358 = vrot.lane.b32.xlu0 %v247, 113
    %v1359 = vpop.permute.xlu0 %1358
    %1360 = vrot.lane.b32.xlu0 %v251, 113
    %v1361 = vpop.permute.xlu0 %1360
    %1362 = vrot.lane.b32.xlu0 %v248, 113
    %v1363 = vpop.permute.xlu0 %1362
    %1364 = vrot.lane.b32.xlu0 %v252, 113
    %v1365 = vpop.permute.xlu0 %1364
    %1366 = vrot.lane.b32.xlu0 %v249, 113
    %v1367 = vpop.permute.xlu0 %1366
    %1368 = vrot.lane.b32.xlu0 %v253, 113
    %v1369 = vpop.permute.xlu0 %1368
    %1370 = vrot.lane.b32.xlu0 %v250, 113
    %v1371 = vpop.permute.xlu0 %1370
    %1372 = vrot.lane.b32.xlu0 %v254, 113
    %v1373 = vpop.permute.xlu0 %1372
    %vm1374 = vcmp.lt.s32.totalorder %v1130, 113
    %v1375 = vsel %vm1374, %v1367, %v1371
    %v1376 = vsel %vm1374, %v1369, %v1373
    %v1377 = vsel %vm1374, %v1363, %v1367
    %v1378 = vsel %vm1374, %v1365, %v1369
    %v1379 = vsel %vm1374, %v1359, %v1363
    %v1380 = vsel %vm1374, %v1361, %v1365
    %v1381 = vsel %vm1374, %v1371, %v1359
    %v1382 = vsel %vm1374, %v1373, %v1361
    %s1383 = scalar_lea.vmem [#allocation8], 6
    %v1384 = vld [vmem:[%s1383] ss:$8 sm:$0xf]
    %v1386 = vperm.slane %v1384, 0
    %v1387 = vperm.slane %v1384, 1
    %v1388 = vperm.slane %v1384, 2
    %v1389 = vperm.slane %v1384, 3
    %v1394 = vmul.f32 %v1379, %v1386
    %v1395 = vmul.f32 %v1377, %v1387
    %v1396 = vmul.f32 %v1375, %v1388
    %v1397 = vmul.f32 %v1381, %v1389
    %v1398 = vmul.f32 %v1380, %v1386
    %v1399 = vmul.f32 %v1378, %v1387
    %v1400 = vmul.f32 %v1376, %v1388
    %v1401 = vmul.f32 %v1382, %v1389
    %v1402 = vpack.c.bf16 %v1395, %v1394
    %v1403 = vpack.c.bf16 %v1397, %v1396
    %v1404 = vpack.c.bf16 %v1399, %v1398
    %v1405 = vpack.c.bf16 %v1401, %v1400
    %1406 = vrot.lane.b32.xlu0 %v247, 112
    %v1407 = vpop.permute.xlu0 %1406
    %1408 = vrot.lane.b32.xlu0 %v251, 112
    %v1409 = vpop.permute.xlu0 %1408
    %1410 = vrot.lane.b32.xlu0 %v248, 112
    %v1411 = vpop.permute.xlu0 %1410
    %1412 = vrot.lane.b32.xlu0 %v252, 112
    %v1413 = vpop.permute.xlu0 %1412
    %1414 = vrot.lane.b32.xlu0 %v249, 112
    %v1415 = vpop.permute.xlu0 %1414
    %1416 = vrot.lane.b32.xlu0 %v253, 112
    %v1417 = vpop.permute.xlu0 %1416
    %1418 = vrot.lane.b32.xlu0 %v250, 112
    %v1419 = vpop.permute.xlu0 %1418
    %1420 = vrot.lane.b32.xlu0 %v254, 112
    %v1421 = vpop.permute.xlu0 %1420
    %vm1422 = vcmp.lt.s32.totalorder %v1130, 112
    %v1423 = vsel %vm1422, %v1415, %v1419
    %v1424 = vsel %vm1422, %v1417, %v1421
    %v1425 = vsel %vm1422, %v1411, %v1415
    %v1426 = vsel %vm1422, %v1413, %v1417
    %v1427 = vsel %vm1422, %v1407, %v1411
    %v1428 = vsel %vm1422, %v1409, %v1413
    %v1429 = vsel %vm1422, %v1419, %v1407
    %v1430 = vsel %vm1422, %v1421, %v1409
    %s1431 = scalar_lea.vmem [#allocation8], 7
    %v1432 = vld [vmem:[%s1431] ss:$8 sm:$0xf]
    %v1434 = vperm.slane %v1432, 0
    %v1435 = vperm.slane %v1432, 1
    %v1436 = vperm.slane %v1432, 2
    %v1437 = vperm.slane %v1432, 3
    %v1442 = vmul.f32 %v1427, %v1434
    %v1443 = vmul.f32 %v1425, %v1435
    %v1444 = vmul.f32 %v1423, %v1436
    %v1445 = vmul.f32 %v1429, %v1437
    %v1446 = vmul.f32 %v1428, %v1434
    %v1447 = vmul.f32 %v1426, %v1435
    %v1448 = vmul.f32 %v1424, %v1436
    %v1449 = vmul.f32 %v1430, %v1437
    %v1450 = vpack.c.bf16 %v1443, %v1442
    %v1451 = vpack.c.bf16 %v1445, %v1444
    %v1452 = vpack.c.bf16 %v1447, %v1446
    %v1453 = vpack.c.bf16 %v1449, %v1448
    %1454 = vrot.lane.b32.xlu0 %v247, 111
    %v1455 = vpop.permute.xlu0 %1454
    %1456 = vrot.lane.b32.xlu0 %v251, 111
    %v1457 = vpop.permute.xlu0 %1456
    %1458 = vrot.lane.b32.xlu0 %v248, 111
    %v1459 = vpop.permute.xlu0 %1458
    %1460 = vrot.lane.b32.xlu0 %v252, 111
    %v1461 = vpop.permute.xlu0 %1460
    %1462 = vrot.lane.b32.xlu0 %v249, 111
    %v1463 = vpop.permute.xlu0 %1462
    %1464 = vrot.lane.b32.xlu0 %v253, 111
    %v1465 = vpop.permute.xlu0 %1464
    %1466 = vrot.lane.b32.xlu0 %v250, 111
    %v1467 = vpop.permute.xlu0 %1466
    %1468 = vrot.lane.b32.xlu0 %v254, 111
    %v1469 = vpop.permute.xlu0 %1468
    %vm1470 = vcmp.lt.s32.totalorder %v1130, 111
    %v1471 = vsel %vm1470, %v1463, %v1467
    %v1472 = vsel %vm1470, %v1465, %v1469
    %v1473 = vsel %vm1470, %v1459, %v1463
    %v1474 = vsel %vm1470, %v1461, %v1465
    %v1475 = vsel %vm1470, %v1455, %v1459
    %v1476 = vsel %vm1470, %v1457, %v1461
    %v1477 = vsel %vm1470, %v1467, %v1455
    %v1478 = vsel %vm1470, %v1469, %v1457
    %s1479 = scalar_lea.vmem [#allocation8], 32
    %v1480 = vld [vmem:[%s1479] ss:$8 sm:$0xf]
    %v1482 = vperm.slane %v1480, 0
    %v1483 = vperm.slane %v1480, 1
    %v1484 = vperm.slane %v1480, 2
    %v1485 = vperm.slane %v1480, 3
    %v1490 = vmul.f32 %v1475, %v1482
    %v1491 = vmul.f32 %v1473, %v1483
    %v1492 = vmul.f32 %v1471, %v1484
    %v1493 = vmul.f32 %v1477, %v1485
    %v1494 = vmul.f32 %v1476, %v1482
    %v1495 = vmul.f32 %v1474, %v1483
    %v1496 = vmul.f32 %v1472, %v1484
    %v1497 = vmul.f32 %v1478, %v1485
    %v1498 = vpack.c.bf16 %v1491, %v1490
    %v1499 = vpack.c.bf16 %v1493, %v1492
    %v1500 = vpack.c.bf16 %v1495, %v1494
    %v1501 = vpack.c.bf16 %v1497, %v1496
    %v1506 = vunpack.c.l.b16 %v1158
    %v1507 = vunpack.c.h.b16 %v1158
    %v1508 = vunpack.c.l.b16 %v1159
    %v1509 = vunpack.c.h.b16 %v1159
    %v1510 = vunpack.c.l.b16 %v1160
    %v1511 = vunpack.c.h.b16 %v1160
    %v1512 = vunpack.c.l.b16 %v1161
    %v1513 = vunpack.c.h.b16 %v1161
    %v1514 = vpack.c.b16 %v1510, %v1506
    %v1515 = vpack.c.b16 %v1511, %v1507
    %v1516 = vpack.c.b16 %v1512, %v1508
    %v1517 = vpack.c.b16 %v1513, %v1509
    %v1526 = vunpack.c.l.b16 %v1206
    %v1527 = vunpack.c.h.b16 %v1206
    %v1528 = vunpack.c.l.b16 %v1207
    %v1529 = vunpack.c.h.b16 %v1207
    %v1530 = vunpack.c.l.b16 %v1208
    %v1531 = vunpack.c.h.b16 %v1208
    %v1532 = vunpack.c.l.b16 %v1209
    %v1533 = vunpack.c.h.b16 %v1209
    %v1534 = vpack.c.b16 %v1530, %v1526
    %v1535 = vpack.c.b16 %v1531, %v1527
    %v1536 = vpack.c.b16 %v1532, %v1528
    %v1537 = vpack.c.b16 %v1533, %v1529
    %v1546 = vunpack.c.l.b16 %v1254
    %v1547 = vunpack.c.h.b16 %v1254
    %v1548 = vunpack.c.l.b16 %v1255
    %v1549 = vunpack.c.h.b16 %v1255
    %v1550 = vunpack.c.l.b16 %v1256
    %v1551 = vunpack.c.h.b16 %v1256
    %v1552 = vunpack.c.l.b16 %v1257
    %v1553 = vunpack.c.h.b16 %v1257
    %v1554 = vpack.c.b16 %v1550, %v1546
    %v1555 = vpack.c.b16 %v1551, %v1547
    %v1556 = vpack.c.b16 %v1552, %v1548
    %v1557 = vpack.c.b16 %v1553, %v1549
    %v1566 = vunpack.c.l.b16 %v1302
    %v1567 = vunpack.c.h.b16 %v1302
    %v1568 = vunpack.c.l.b16 %v1303
    %v1569 = vunpack.c.h.b16 %v1303
    %v1570 = vunpack.c.l.b16 %v1304
    %v1571 = vunpack.c.h.b16 %v1304
    %v1572 = vunpack.c.l.b16 %v1305
    %v1573 = vunpack.c.h.b16 %v1305
    %v1574 = vpack.c.b16 %v1570, %v1566
    %v1575 = vpack.c.b16 %v1571, %v1567
    %v1576 = vpack.c.b16 %v1572, %v1568
    %v1577 = vpack.c.b16 %v1573, %v1569
    %v1586 = vunpack.c.l.b16 %v1306
    %v1587 = vunpack.c.h.b16 %v1306
    %v1588 = vunpack.c.l.b16 %v1307
    %v1589 = vunpack.c.h.b16 %v1307
    %v1590 = vunpack.c.l.b16 %v1308
    %v1591 = vunpack.c.h.b16 %v1308
    %v1592 = vunpack.c.l.b16 %v1309
    %v1593 = vunpack.c.h.b16 %v1309
    %v1594 = vpack.c.b16 %v1590, %v1586
    %v1595 = vpack.c.b16 %v1591, %v1587
    %v1596 = vpack.c.b16 %v1592, %v1588
    %v1597 = vpack.c.b16 %v1593, %v1589
    %v1606 = vunpack.c.l.b16 %v1354
    %v1607 = vunpack.c.h.b16 %v1354
    %v1608 = vunpack.c.l.b16 %v1355
    %v1609 = vunpack.c.h.b16 %v1355
    %v1610 = vunpack.c.l.b16 %v1356
    %v1611 = vunpack.c.h.b16 %v1356
    %v1612 = vunpack.c.l.b16 %v1357
    %v1613 = vunpack.c.h.b16 %v1357
    %v1614 = vpack.c.b16 %v1610, %v1606
    %v1615 = vpack.c.b16 %v1611, %v1607
    %v1616 = vpack.c.b16 %v1612, %v1608
    %v1617 = vpack.c.b16 %v1613, %v1609
    %v1626 = vunpack.c.l.b16 %v1402
    %v1627 = vunpack.c.h.b16 %v1402
    %v1628 = vunpack.c.l.b16 %v1403
    %v1629 = vunpack.c.h.b16 %v1403
    %v1630 = vunpack.c.l.b16 %v1404
    %v1631 = vunpack.c.h.b16 %v1404
    %v1632 = vunpack.c.l.b16 %v1405
    %v1633 = vunpack.c.h.b16 %v1405
    %v1634 = vpack.c.b16 %v1630, %v1626
    %v1635 = vpack.c.b16 %v1631, %v1627
    %v1636 = vpack.c.b16 %v1632, %v1628
    %v1637 = vpack.c.b16 %v1633, %v1629
    %v1646 = vunpack.c.l.b16 %v1450
    %v1647 = vunpack.c.h.b16 %v1450
    %v1648 = vunpack.c.l.b16 %v1451
    %v1649 = vunpack.c.h.b16 %v1451
    %v1650 = vunpack.c.l.b16 %v1452
    %v1651 = vunpack.c.h.b16 %v1452
    %v1652 = vunpack.c.l.b16 %v1453
    %v1653 = vunpack.c.h.b16 %v1453
    %v1654 = vpack.c.b16 %v1650, %v1646
    %v1655 = vpack.c.b16 %v1651, %v1647
    %v1656 = vpack.c.b16 %v1652, %v1648
    %v1657 = vpack.c.b16 %v1653, %v1649
    %v1666 = vunpack.c.l.b16 %v1498
    %v1667 = vunpack.c.h.b16 %v1498
    %v1668 = vunpack.c.l.b16 %v1499
    %v1669 = vunpack.c.h.b16 %v1499
    %v1670 = vunpack.c.l.b16 %v1500
    %v1671 = vunpack.c.h.b16 %v1500
    %v1672 = vunpack.c.l.b16 %v1501
    %v1673 = vunpack.c.h.b16 %v1501
    %v1674 = vpack.c.b16 %v1670, %v1666
    %v1675 = vpack.c.b16 %v1671, %v1667
    %v1676 = vpack.c.b16 %v1672, %v1668
    %v1677 = vpack.c.b16 %v1673, %v1669
    %v1682 = vld [vmem:[%s4] sm:$0xff]
    %v1683 = vld [vmem:[%s4 + $0x8] sm:$0xff]
    %1685 = vset.pattern.permute.xlu0 0
    %1686 = vperm.xlu0 %1685, %v1682
    %v1687 = vpop.permute.xlu0 %1686
    %1690 = vset.pattern.permute.xlu0 0
    %1691 = vperm.xlu0 %1690, %v1683
    %v1692 = vpop.permute.xlu0 %1691
    %v1696 = vunpack.c.l.b16 %v1111
    %v1697 = vunpack.c.h.b16 %v1111
    %v1698 = vunpack.c.l.b16 %v1112
    %v1699 = vunpack.c.h.b16 %v1112
    %v1700 = vpack.c.b16 %v1698, %v1696
    %v1701 = vpack.c.b16 %v1699, %v1697
    %vm1703 = vcmask 130048
    %v1705 = vsel %vm1703, %v1701, 0
    %1707 = vmatpush.bf16.msra.mxu0 %v1654
    %1708 = vmatpush.bf16.msra.mxu0 %v1634
    %1709 = vmatpush.bf16.msra.mxu0 %v1614
    %1710 = vmatpush.bf16.msra.mxu0 %v1594
    %1711 = vmatpush.bf16.msra.mxu0 %v1574
    %1712 = vmatpush.bf16.msra.mxu0 %v1554
    %1713 = vmatpush.bf16.msra.mxu0 %v1534
    %1714 = vmatpush.bf16.msra.mxu0 %v1514
    %1715 = vmatmul.bf16.gmra.mxu0 %v1700
    %v1716 = vpop.f32.mrf.mxu0
    %v1717 = vadd.f32 %v1687, %v1716
    %v1718 = vpop.f32.mrf.mxu0
    %v1719 = vadd.f32 %v1692, %v1718
    %1720 = vdwg.mxu0
    %1721 = vmatpush.bf16.msra.mxu0 0
    %1722 = vmatpush.bf16.msra.mxu0 0
    %1723 = vmatpush.bf16.msra.mxu0 0
    %1724 = vmatpush.bf16.msra.mxu0 0
    %1725 = vmatpush.bf16.msra.mxu0 0
    %1726 = vmatpush.bf16.msra.mxu0 0
    %1727 = vmatpush.bf16.msra.mxu0 0
    %1728 = vmatpush.bf16.msra.mxu0 %v1674
    %1729 = vmatmul.bf16.gmra.mxu0 %v1705
    %v1730 = vpop.f32.mrf.mxu0
    %v1731 = vadd.f32 %v1717, %v1730
    %v1732 = vpop.f32.mrf.mxu0
    %v1733 = vadd.f32 %v1719, %v1732
    %1734 = vdwg.mxu0
    %1735 = vmatpush.bf16.msra.mxu0 %v1655
    %1736 = vmatpush.bf16.msra.mxu0 %v1635
    %1737 = vmatpush.bf16.msra.mxu0 %v1615
    %1738 = vmatpush.bf16.msra.mxu0 %v1595
    %1739 = vmatpush.bf16.msra.mxu0 %v1575
    %1740 = vmatpush.bf16.msra.mxu0 %v1555
    %1741 = vmatpush.bf16.msra.mxu0 %v1535
    %1742 = vmatpush.bf16.msra.mxu0 %v1515
    %1743 = vmatmul.bf16.gmra.mxu0 %v1700
    %v1744 = vpop.f32.mrf.mxu0
    %v1745 = vadd.f32 %v1687, %v1744
    %v1746 = vpop.f32.mrf.mxu0
    %v1747 = vadd.f32 %v1692, %v1746
    %1748 = vdwg.mxu0
    %1749 = vmatpush.bf16.msra.mxu0 0
    %1750 = vmatpush.bf16.msra.mxu0 0
    %1751 = vmatpush.bf16.msra.mxu0 0
    %1752 = vmatpush.bf16.msra.mxu0 0
    %1753 = vmatpush.bf16.msra.mxu0 0
    %1754 = vmatpush.bf16.msra.mxu0 0
    %1755 = vmatpush.bf16.msra.mxu0 0
    %1756 = vmatpush.bf16.msra.mxu0 %v1675
    %1757 = vmatmul.bf16.gmra.mxu0 %v1705
    %v1758 = vpop.f32.mrf.mxu0
    %v1759 = vadd.f32 %v1745, %v1758
    %v1760 = vpop.f32.mrf.mxu0
    %v1761 = vadd.f32 %v1747, %v1760
    %1762 = vdwg.mxu0
    %1763 = vmatpush.bf16.msra.mxu0 %v1656
    %1764 = vmatpush.bf16.msra.mxu0 %v1636
    %1765 = vmatpush.bf16.msra.mxu0 %v1616
    %1766 = vmatpush.bf16.msra.mxu0 %v1596
    %1767 = vmatpush.bf16.msra.mxu0 %v1576
    %1768 = vmatpush.bf16.msra.mxu0 %v1556
    %1769 = vmatpush.bf16.msra.mxu0 %v1536
    %1770 = vmatpush.bf16.msra.mxu0 %v1516
    %1771 = vmatmul.bf16.gmra.mxu0 %v1700
    %v1772 = vpop.f32.mrf.mxu0
    %v1773 = vadd.f32 %v1687, %v1772
    %v1774 = vpop.f32.mrf.mxu0
    %v1775 = vadd.f32 %v1692, %v1774
    %1776 = vdwg.mxu0
    %1777 = vmatpush.bf16.msra.mxu0 0
    %1778 = vmatpush.bf16.msra.mxu0 0
    %1779 = vmatpush.bf16.msra.mxu0 0
    %1780 = vmatpush.bf16.msra.mxu0 0
    %1781 = vmatpush.bf16.msra.mxu0 0
    %1782 = vmatpush.bf16.msra.mxu0 0
    %1783 = vmatpush.bf16.msra.mxu0 0
    %1784 = vmatpush.bf16.msra.mxu0 %v1676
    %1785 = vmatmul.bf16.gmra.mxu0 %v1705
    %v1786 = vpop.f32.mrf.mxu0
    %v1787 = vadd.f32 %v1773, %v1786
    %v1788 = vpop.f32.mrf.mxu0
    %v1789 = vadd.f32 %v1775, %v1788
    %1790 = vdwg.mxu0
    %1791 = vmatpush.bf16.msra.mxu0 %v1657
    %1792 = vmatpush.bf16.msra.mxu0 %v1637
    %1793 = vmatpush.bf16.msra.mxu0 %v1617
    %1794 = vmatpush.bf16.msra.mxu0 %v1597
    %1795 = vmatpush.bf16.msra.mxu0 %v1577
    %1796 = vmatpush.bf16.msra.mxu0 %v1557
    %1797 = vmatpush.bf16.msra.mxu0 %v1537
    %1798 = vmatpush.bf16.msra.mxu0 %v1517
    %1799 = vmatmul.bf16.gmra.mxu0 %v1700
    %v1800 = vpop.f32.mrf.mxu0
    %v1801 = vadd.f32 %v1687, %v1800
    %v1802 = vpop.f32.mrf.mxu0
    %v1803 = vadd.f32 %v1692, %v1802
    %1804 = vdwg.mxu0
    %1805 = vmatpush.bf16.msra.mxu0 0
    %1806 = vmatpush.bf16.msra.mxu0 0
    %1807 = vmatpush.bf16.msra.mxu0 0
    %1808 = vmatpush.bf16.msra.mxu0 0
    %1809 = vmatpush.bf16.msra.mxu0 0
    %1810 = vmatpush.bf16.msra.mxu0 0
    %1811 = vmatpush.bf16.msra.mxu0 0
    %1812 = vmatpush.bf16.msra.mxu0 %v1677
    %1813 = vmatmul.bf16.gmra.mxu0 %v1705
    %v1814 = vpop.f32.mrf.mxu0
    %v1815 = vadd.f32 %v1801, %v1814
    %v1816 = vpop.f32.mrf.mxu0
    %v1817 = vadd.f32 %v1803, %v1816
    %1818 = vdwg.mxu0
    %v1819 = vmax.f32 %v1731, 0.0
    %v1820 = vmax.f32 %v1759, 0.0
    %v1821 = vmax.f32 %v1787, 0.0
    %v1822 = vmax.f32 %v1815, 0.0
    %v1823 = vmax.f32 %v1733, 0.0
    %v1824 = vmax.f32 %v1761, 0.0
    %v1825 = vmax.f32 %v1789, 0.0
    %v1826 = vmax.f32 %v1817, 0.0
    %v1827 = vmul.f32 %v1819, %v1012
    %v1828 = vmul.f32 %v1820, %v1026
    %v1829 = vmul.f32 %v1821, %v1040
    %v1830 = vmul.f32 %v1822, %v1054
    %v1831 = vmul.f32 %v1823, %v1068
    %v1832 = vmul.f32 %v1824, %v1082
    %v1833 = vmul.f32 %v1825, %v1096
    %v1834 = vmul.f32 %v1826, %v1110
    %v1835 = vld [vmem:[%s5] sm:$0xf]
    %v1836 = vld [vmem:[%s5 + $0x4] sm:$0xf]
    %v1837 = vld [vmem:[%s5 + $0x8] sm:$0xf]
    %v1838 = vld [vmem:[%s5 + $0xc] sm:$0xf]
    %v1839 = vpack.c.bf16 %v1831, %v1827
    %v1840 = vpack.c.bf16 %v1832, %v1828
    %v1841 = vpack.c.bf16 %v1833, %v1829
    %v1842 = vpack.c.bf16 %v1834, %v1830
    %v1843 = vld [vmem:[%s6] sm:$0xff]
    %v1844 = vld [vmem:[%s6 + $0x8] sm:$0xff]
    %v1845 = vld [vmem:[%s6 + $0x10] sm:$0xff]
    %v1846 = vld [vmem:[%s6 + $0x18] sm:$0xff]
    %1848 = vset.pattern.permute.xlu0 0
    %1849 = vperm.xlu0 %1848, %v1843
    %v1850 = vpop.permute.xlu0 %1849
    %1853 = vset.pattern.permute.xlu0 0
    %1854 = vperm.xlu0 %1853, %v1844
    %v1855 = vpop.permute.xlu0 %1854
    %1858 = vset.pattern.permute.xlu0 0
    %1859 = vperm.xlu0 %1858, %v1845
    %v1860 = vpop.permute.xlu0 %1859
    %1863 = vset.pattern.permute.xlu0 0
    %1864 = vperm.xlu0 %1863, %v1846
    %v1865 = vpop.permute.xlu0 %1864
    %v1871 = vunpack.c.l.b16 %v1835
    %v1872 = vunpack.c.l.b16 %v1836
    %v1873 = vunpack.c.l.b16 %v1837
    %v1874 = vunpack.c.l.b16 %v1838
    %v1875 = vpack.c.b16 %v1872, %v1871
    %v1876 = vpack.c.b16 %v1874, %v1873
    %v1878 = vsel %vm1703, %v1875, 0
    %v1881 = vsel %vm1703, %v1876, 0
    %1883 = vmatpush.bf16.msra.mxu0 0
    %1884 = vmatpush.bf16.msra.mxu0 0
    %1885 = vmatpush.bf16.msra.mxu0 0
    %1886 = vmatpush.bf16.msra.mxu0 0
    %1887 = vmatpush.bf16.msra.mxu0 0
    %1888 = vmatpush.bf16.msra.mxu0 0
    %1889 = vmatpush.bf16.msra.mxu0 0
    %1890 = vmatpush.bf16.msra.mxu0 %v1839
    %1891 = vmatmul.bf16.gmra.mxu0 %v1878
    %v1892 = vpop.f32.mrf.mxu0
    %v1893 = vadd.f32 %v1850, %v1892
    %v1894 = vpop.f32.mrf.mxu0
    %v1895 = vadd.f32 %v1855, %v1894
    %1896 = vmatmul.bf16.gmra.mxu0 %v1881
    %v1897 = vpop.f32.mrf.mxu0
    %v1898 = vadd.f32 %v1860, %v1897
    %v1899 = vpop.f32.mrf.mxu0
    %v1900 = vadd.f32 %v1865, %v1899
    %1901 = vdwg.mxu0
    %1902 = vmatpush.bf16.msra.mxu0 0
    %1903 = vmatpush.bf16.msra.mxu0 0
    %1904 = vmatpush.bf16.msra.mxu0 0
    %1905 = vmatpush.bf16.msra.mxu0 0
    %1906 = vmatpush.bf16.msra.mxu0 0
    %1907 = vmatpush.bf16.msra.mxu0 0
    %1908 = vmatpush.bf16.msra.mxu0 0
    %1909 = vmatpush.bf16.msra.mxu0 %v1840
    %1910 = vmatmul.bf16.gmra.mxu0 %v1878
    %v1911 = vpop.f32.mrf.mxu0
    %v1912 = vadd.f32 %v1850, %v1911
    %v1913 = vpop.f32.mrf.mxu0
    %v1914 = vadd.f32 %v1855, %v1913
    %1915 = vmatmul.bf16.gmra.mxu0 %v1881
    %v1916 = vpop.f32.mrf.mxu0
    %v1917 = vadd.f32 %v1860, %v1916
    %v1918 = vpop.f32.mrf.mxu0
    %v1919 = vadd.f32 %v1865, %v1918
    %1920 = vdwg.mxu0
    %1921 = vmatpush.bf16.msra.mxu0 0
    %1922 = vmatpush.bf16.msra.mxu0 0
    %1923 = vmatpush.bf16.msra.mxu0 0
    %1924 = vmatpush.bf16.msra.mxu0 0
    %1925 = vmatpush.bf16.msra.mxu0 0
    %1926 = vmatpush.bf16.msra.mxu0 0
    %1927 = vmatpush.bf16.msra.mxu0 0
    %1928 = vmatpush.bf16.msra.mxu0 %v1841
    %1929 = vmatmul.bf16.gmra.mxu0 %v1878
    %v1930 = vpop.f32.mrf.mxu0
    %v1931 = vadd.f32 %v1850, %v1930
    %v1932 = vpop.f32.mrf.mxu0
    %v1933 = vadd.f32 %v1855, %v1932
    %1934 = vmatmul.bf16.gmra.mxu0 %v1881
    %v1935 = vpop.f32.mrf.mxu0
    %v1936 = vadd.f32 %v1860, %v1935
    %v1937 = vpop.f32.mrf.mxu0
    %v1938 = vadd.f32 %v1865, %v1937
    %1939 = vdwg.mxu0
    %1940 = vmatpush.bf16.msra.mxu0 0
    %1941 = vmatpush.bf16.msra.mxu0 0
    %1942 = vmatpush.bf16.msra.mxu0 0
    %1943 = vmatpush.bf16.msra.mxu0 0
    %1944 = vmatpush.bf16.msra.mxu0 0
    %1945 = vmatpush.bf16.msra.mxu0 0
    %1946 = vmatpush.bf16.msra.mxu0 0
    %1947 = vmatpush.bf16.msra.mxu0 %v1842
    %1948 = vmatmul.bf16.gmra.mxu0 %v1878
    %v1949 = vpop.f32.mrf.mxu0
    %v1950 = vadd.f32 %v1850, %v1949
    %v1951 = vpop.f32.mrf.mxu0
    %v1952 = vadd.f32 %v1855, %v1951
    %1953 = vmatmul.bf16.gmra.mxu0 %v1881
    %v1954 = vpop.f32.mrf.mxu0
    %v1955 = vadd.f32 %v1860, %v1954
    %v1956 = vpop.f32.mrf.mxu0
    %v1957 = vadd.f32 %v1865, %v1956
    %1958 = vdwg.mxu0
    %1959 = vst [vmem:[#allocation10] sm:$0xff] %v1893
    %1960 = vst [vmem:[#allocation10 + $0x8] sm:$0xff] %v1912
    %1961 = vst [vmem:[#allocation10 + $0x10] sm:$0xff] %v1931
    %1962 = vst [vmem:[#allocation10 + $0x18] sm:$0xff] %v1950
    %1963 = vst [vmem:[#allocation10 + $0x20] sm:$0xff] %v1895
    %1964 = vst [vmem:[#allocation10 + $0x28] sm:$0xff] %v1914
    %1965 = vst [vmem:[#allocation10 + $0x30] sm:$0xff] %v1933
    %1966 = vst [vmem:[#allocation10 + $0x38] sm:$0xff] %v1952
    %1967 = vst [vmem:[#allocation10 + $0x40] sm:$0xff] %v1898
    %1968 = vst [vmem:[#allocation10 + $0x48] sm:$0xff] %v1917
    %1969 = vst [vmem:[#allocation10 + $0x50] sm:$0xff] %v1936
    %1970 = vst [vmem:[#allocation10 + $0x58] sm:$0xff] %v1955
    %1971 = vst [vmem:[#allocation10 + $0x60] sm:$0xff] %v1900
    %1972 = vst [vmem:[#allocation10 + $0x68] sm:$0xff] %v1919
    %1973 = vst [vmem:[#allocation10 + $0x70] sm:$0xff] %v1938
    %1974 = vst [vmem:[#allocation10 + $0x78] sm:$0xff] %v1957
    // Predicated region
    $region78: #{tpu_custom_call.1} parent=1 // pred_check
      _
    $region79: #{tpu_custom_call.1} parent=1 // pred_check_branch
      %1976 = sbr.rel (0) target = $region81
    $region80: #{tpu_custom_call.1} parent=1 // pred_region
      %1978 = vsyncadd [#allocation4], 0
      %s1979 = sshll.u32 [#allocation10], 4
      %s1980 = int_to_ptr.vmem [resolvable:$true] %s1979
      %s1981 = sshll.u32 %s15, 4
      %s1982 = int_to_ptr.hbm [resolvable:$true] %s1981
      %1987 = dma.vmem_to_hbm [thread:$0]  %s1980, 2048, %s1982, [#allocation4], 512, 512, 32
    $region81: #{tpu_custom_call.1} parent=1 // pred_fallthru
      _
    // Predicated region
    $region82: #{tpu_custom_call.1} parent=1 // pred_check
      _
    $region83: #{tpu_custom_call.1} parent=1 // pred_check_branch
      %1989 = sbr.rel (0) target = $region85
    $region84: #{tpu_custom_call.1} parent=1 // pred_region
      %1991 = dma.done [#allocation4], 2048
    $region85: #{tpu_custom_call.1} parent=1 // pred_fallthru
      _
    %1992 = vsyncpa [#allocation3], 1
    %1993 = vsyncpa [#allocation6], 1
    %1994 = vsyncpa [#allocation9], 1
    %1995 = vsyncpa [#allocation4], 1

</llo_original>
